<compile_context>
chip_gen: v7x
topology: tpu7x:2x2x1
jax: 0.10.0
libtpu: 0.0.40
codegen_flags: <defaults>
</compile_context>

<pallas_src>
import functools

import numpy as np
import jax
import jax.numpy as jnp
from jax import lax
from jax.experimental import pallas as pl
from jax.experimental.pallas import tpu as pltpu


def _round_up(x, m):
    return (x + m - 1) // m * m


@functools.lru_cache(maxsize=None)
def _vmem_capacity_bytes():
    """Per-TensorCore VMEM capacity (v5e/v6e: 128 MiB, v7x: 64 MiB)."""
    try:
        cap = getattr(pltpu.get_tpu_info(), "vmem_capacity_bytes", None)
        if cap:
            return int(cap)
    except Exception:
        pass
    return 64 * 1024 * 1024  # conservative default = v7x per-core VMEM


# -----------------------------------------------------------------------------
# Fast path: padded table resident in VMEM, gather as per-field one-hot matmuls
# on the MXU, output written as a field-packed lane-dense (T_b, F*D) block.
# -----------------------------------------------------------------------------
def _make_onehot_gather_kernel(num_fields, dim, precision):
    def kernel(idx_ref, table_ref, out_ref):
        # idx_ref  : (T_b, F) int32  -- offset-added, clamped indices for this tile
        # table_ref: (V_pad, D)      -- full padded table (constant index_map)
        # out_ref  : (T_b, F*D)      -- lane-dense when F*D is a multiple of 128
        t_b = out_ref.shape[0]
        v_pad = table_ref.shape[0]
        table = table_ref[...]
        # Hoisted out of the field loop (JAX does not CSE broadcast_in_dim).
        col = lax.broadcasted_iota(jnp.int32, (t_b, v_pad), 1)
        for fld in range(num_fields):
            onehot = (idx_ref[:, fld:fld + 1] == col).astype(table.dtype)
            rows = jnp.dot(onehot, table, precision=precision,
                           preferred_element_type=jnp.float32)
            out_ref[:, fld * dim:(fld + 1) * dim] = rows.astype(out_ref.dtype)
    return kernel


_ONEHOT_TILE_BYTES = 2 * 1024 * 1024   # cap on the (T_b, V_pad) one-hot intermediate


def _fast_path_tile(batch, v_pad, itemsize, tile_rows):
    if tile_rows is None:
        tile_b = max(8, min(256, (_ONEHOT_TILE_BYTES // (v_pad * itemsize)) // 8 * 8))
    else:
        tile_b = tile_rows
    return min(tile_b, _round_up(batch, 8))


def _fast_path_vmem_bytes(tile_b, num_fields, v_pad, d, itemsize):
    fd = num_fields * d
    return (2 * v_pad * d * itemsize          # resident table (x2: blocked inputs are double-buffered)
            + 2 * tile_b * fd * itemsize      # output blocks
            + 2 * tile_b * num_fields * 4     # index blocks
            + 2 * tile_b * v_pad * itemsize   # one-hot temporaries
            + (2 << 20))                      # misc headroom


def _gather_resident_table(idx, table_padded, tile_b, vmem_cap):
    b, f = idx.shape
    v_pad, d = table_padded.shape
    itemsize = table_padded.dtype.itemsize
    fd = f * d
    b_pad = _round_up(b, tile_b)

    idx_p = idx if b_pad == b else jnp.zeros((b_pad, f), jnp.int32).at[:b].set(idx)

    needed = _fast_path_vmem_bytes(tile_b, f, v_pad, d, itemsize)
    vmem_limit = int(min(max(needed, 32 << 20), vmem_cap - (2 << 20)))

    # f32 table: HIGHEST keeps exact f32 rows (default precision would round the
    # values through bf16).  16-bit tables: a single default-precision MXU pass
    # is already an exact copy of the stored values.
    precision = lax.Precision.DEFAULT if itemsize <= 2 else lax.Precision.HIGHEST

    out = pl.pallas_call(
        _make_onehot_gather_kernel(f, d, precision),
        out_shape=jax.ShapeDtypeStruct((b_pad, fd), table_padded.dtype),
        grid_spec=pltpu.PrefetchScalarGridSpec(
            num_scalar_prefetch=0,
            grid=(b_pad // tile_b,),
            in_specs=[
                pl.BlockSpec((tile_b, f), lambda g: (g, 0)),    # index tile
                pl.BlockSpec((v_pad, d), lambda g: (0, 0)),     # resident table
            ],
            out_specs=pl.BlockSpec((tile_b, fd), lambda g: (g, 0)),
        ),
        compiler_params=pltpu.CompilerParams(
            # Independent batch tiles: lets v7x shard them across its 2 TensorCores.
            dimension_semantics=("parallel",),
            vmem_limit_bytes=vmem_limit,
        ),
        cost_estimate=pl.CostEstimate(
            flops=2 * b_pad * f * v_pad * d,
            transcendentals=0,
            bytes_accessed=(v_pad * d * itemsize + b_pad * f * 4 + b_pad * fd * itemsize),
        ),
    )(idx_p, table_padded)
    return out[:b].reshape(b, f, d)


# -----------------------------------------------------------------------------
# Fallback for very large vocabularies: table stays in HBM; each grid step
# gathers rows through a 16-deep manual DMA queue driven by scalar-prefetched
# indices, DMA-ing every row directly into the output block.
# -----------------------------------------------------------------------------
_DMA_QUEUE_DEPTH = 16


def _make_hbm_gather_kernel(tile_rows, queue_depth):
    def kernel(idx_ref, table_hbm, out_ref, sems):
        # idx_ref  : (N_pad,) int32 in SMEM (scalar prefetch)
        # table_hbm: (V_pad, D) embedding table left in HBM (memory_space=pl.ANY)
        # out_ref  : (T, D) output block; gathered rows land directly in it
        base = pl.program_id(0) * tile_rows

        def row_copy(t):   # identical descriptor used for both start() and wait()
            return pltpu.make_async_copy(
                table_hbm.at[idx_ref[base + t]],
                out_ref.at[t],
                sems.at[t % queue_depth],
            )

        @pl.loop(0, queue_depth)          # prime the queue
        def _(t):
            row_copy(t).start()

        @pl.loop(0, tile_rows)            # wait for row t, keep the queue full
        def _(t):
            row_copy(t).wait()

            @pl.when(t + queue_depth < tile_rows)
            def _():
                row_copy(t + queue_depth).start()

    return kernel


def _gather_hbm_table(idx, table_padded, tile_rows, queue_depth=_DMA_QUEUE_DEPTH):
    # TODO(synk): coalesce duplicate/adjacent indices and/or keep per-field
    # sub-tables resident so fewer lookups hit this latency-bound per-row path.
    b, f = idx.shape
    v_pad, d = table_padded.shape
    n = b * f
    flat_idx = idx.reshape(-1)
    t = max(min(512 if tile_rows is None else tile_rows, _round_up(n, 8)), queue_depth)
    n_pad = _round_up(n, t)
    idx_p = jnp.zeros((n_pad,), jnp.int32).at[:n].set(flat_idx)

    out = pl.pallas_call(
        _make_hbm_gather_kernel(t, queue_depth),
        out_shape=jax.ShapeDtypeStruct((n_pad, d), table_padded.dtype),
        grid_spec=pltpu.PrefetchScalarGridSpec(
            num_scalar_prefetch=1,                          # indices -> SMEM
            grid=(n_pad // t,),
            in_specs=[pl.BlockSpec(memory_space=pl.ANY)],   # table stays in HBM
            out_specs=pl.BlockSpec((t, d), lambda g, idx_ref: (g, 0)),
            scratch_shapes=[pltpu.SemaphoreType.DMA((queue_depth,))],
        ),
        compiler_params=pltpu.CompilerParams(
            dimension_semantics=("parallel",),
        ),
        cost_estimate=pl.CostEstimate(
            flops=0,
            transcendentals=0,
            bytes_accessed=2 * n_pad * d * table_padded.dtype.itemsize + n_pad * 4,
        ),
    )(idx_p, table_padded)
    return out[:n].reshape(b, f, d)


# -----------------------------------------------------------------------------
# Public API
# -----------------------------------------------------------------------------
@functools.partial(jax.jit, static_argnames=("vocab_size", "tile_rows"))
def feature_embedding(x, offsets, table_padded, *, vocab_size, tile_rows=None):
    """x: (B, F) int, offsets: (F,) int, table_padded: (V_pad, D) -> (B, F, D).

    `table_padded` must come from prepare_embedding_table / make_params (vocab
    rows padded to a multiple of 128 once, outside the per-call path).
    """
    if tile_rows is not None and tile_rows % 8 != 0:
        raise ValueError("tile_rows must be a multiple of 8")
    b, f = x.shape
    v_pad, d = table_padded.shape

    # Offset add + clamp.  NOTE: PyTorch's nn.Embedding raises on out-of-range
    # indices; here they are clamped to [0, vocab_size - 1] instead.
    idx = jnp.clip(x.astype(jnp.int32) + offsets.astype(jnp.int32)[None, :],
                   0, vocab_size - 1)

    itemsize = table_padded.dtype.itemsize
    vmem_cap = _vmem_capacity_bytes()
    tile_b = _fast_path_tile(b, v_pad, itemsize, tile_rows)
    if _fast_path_vmem_bytes(tile_b, f, v_pad, d, itemsize) <= int(0.8 * vmem_cap):
        return _gather_resident_table(idx, table_padded, tile_b, vmem_cap)
    return _gather_hbm_table(idx, table_padded, tile_rows)


def prepare_embedding_table(table):
    """Pad the vocab dimension up to a multiple of 128 ONCE (outside forward)."""
    v, d = table.shape
    v_pad = _round_up(max(v, 8), 128)
    if v_pad == v:
        return table
    return jnp.zeros((v_pad, d), table.dtype).at[:v, :].set(table)


def make_params(field_dims, embedding_dim, key, table_dtype=jnp.float32):
    """Matches the PyTorch __init__ (xavier_uniform_ weight + cumsum offsets).

    Returns (table_padded, offsets, vocab_size).  Keep table_dtype=float32 to
    match nn.Embedding exactly; bfloat16 halves table VMEM/HBM traffic and uses
    a single default-precision MXU pass.
    """
    vocab = int(sum(field_dims))
    # nn.init.xavier_uniform_ bound = sqrt(6 / (fan_in + fan_out))
    bound = float(np.sqrt(6.0 / (vocab + embedding_dim)))
    table = jax.random.uniform(
        key, (vocab, embedding_dim), dtype=jnp.float32, minval=-bound, maxval=bound
    ).astype(table_dtype)
    offsets = jnp.asarray(np.array((0, *np.cumsum(field_dims)[:-1]), dtype=np.int32))
    return prepare_embedding_table(table), offsets, vocab


if __name__ == "__main__":
    field_dims = [10, 20, 30, 40]   # 4 categorical fields, total vocab = 100
    embedding_dim = 32              # F*D = 128 -> fully lane-dense output rows

    root = jax.random.PRNGKey(0)
    k_table, k_x = jax.random.split(root)
    table_padded, offsets, vocab = make_params(field_dims, embedding_dim, k_table)

    def make_x(key, batch):
        cols = []
        for f_i, fd in enumerate(field_dims):
            kf = jax.random.fold_in(key, f_i)
            cols.append(jax.random.randint(kf, (batch,), 0, fd, dtype=jnp.int32))
        return jnp.stack(cols, axis=1)   # (B, F) int32

    # batch=2 exercises the padded single-tile case; batch=96 a full-size tile.
    for batch in (2, 96):
        x = make_x(jax.random.fold_in(k_x, batch), batch)
        out = jax.block_until_ready(
            feature_embedding(x, offsets, table_padded, vocab_size=vocab))

        # Reference: plain-JAX gather (same semantics as nn.Embedding).  Padding
        # rows are zero and never indexed, so the padded table gives identical rows.
        ref = jnp.take(table_padded, x + offsets[None, :], axis=0)
        assert out.shape == (batch, len(field_dims), embedding_dim)
        # A wrong-row gather differs by O(0.1) per element; with Precision.HIGHEST
        # the f32 rows are (near-)exact, so atol=1e-4 also guards against a silent
        # bf16-rounded gather while validating row selection unambiguously.
        np.testing.assert_allclose(np.asarray(out), np.asarray(ref), rtol=0, atol=1e-4)

    print("KERNEL_OK")
</pallas_src>

<mosaic_0001>
module attributes {stable_mosaic.version = 11 : i64} {
  func.func @kernel(%arg0: i32, %arg1: memref<8x4xi32, #tpu.memory_space<vmem>>, %arg2: memref<128x32xf32, #tpu.memory_space<vmem>>, %arg3: memref<8x128xf32, #tpu.memory_space<vmem>>) attributes {dimension_semantics = [#tpu.dimension_semantics<parallel>], iteration_bounds = array<i64: 1>, scalar_prefetch = 0 : i64, scratch_operands = 0 : i64, tpu.core_type = #tpu.core_type<tc>, window_params = [{transform_indices = @transform_0, window_bounds = array<i64: 8, 4>}, {pipeline_mode = #tpu.pipeline_mode<synchronous>, transform_indices = @transform_1, window_bounds = array<i64: 128, 32>}, {transform_indices = @transform_2, window_bounds = array<i64: 8, 128>}]} {
    %c0 = arith.constant 0 : index
    %c0_0 = arith.constant 0 : index
    %0 = vector.load %arg2[%c0, %c0_0] : memref<128x32xf32, #tpu.memory_space<vmem>>, vector<128x32xf32>
    %1 = tpu.iota {dimensions = array<i32: 1>} : vector<8x128xi32>
    %c0_1 = arith.constant 0 : index
    %c0_2 = arith.constant 0 : index
    %2 = vector.load %arg1[%c0_1, %c0_2] : memref<8x4xi32, #tpu.memory_space<vmem>>, vector<8x1xi32>
    %3 = vector.broadcast %2 : vector<8x1xi32> to vector<8x128xi32>
    %4 = arith.cmpi eq, %3, %1 : vector<8x128xi32>
    %5 = arith.extui %4 : vector<8x128xi1> to vector<8x128xi32>
    %6 = arith.sitofp %5 : vector<8x128xi32> to vector<8x128xf32>
    %cst = arith.constant dense<0.000000e+00> : vector<8x32xf32>
    %7 = tpu.matmul %6, %0, %cst {dimension_numbers = #tpu.dot_dimension_numbers<[1], [0], [0], [1], [0, 0, 1, 1], [], []>, precision = #tpu.contract_precision<fp32>} : vector<8x128xf32>, vector<128x32xf32>, vector<8x32xf32> -> vector<8x32xf32>
    %c0_3 = arith.constant 0 : index
    %c0_4 = arith.constant 0 : index
    %8 = vector.load %arg3[%c0_3, %c0_4] : memref<8x128xf32, #tpu.memory_space<vmem>>, vector<8x32xf32>
    tpu.vector_store %arg3[%c0_3, %c0_4], %7 {strides = array<i32>} : memref<8x128xf32, #tpu.memory_space<vmem>>, vector<8x32xf32>,
    %c0_5 = arith.constant 0 : index
    %c1 = arith.constant 1 : index
    %9 = vector.load %arg1[%c0_5, %c1] : memref<8x4xi32, #tpu.memory_space<vmem>>, vector<8x1xi32>
    %10 = vector.broadcast %9 : vector<8x1xi32> to vector<8x128xi32>
    %11 = arith.cmpi eq, %10, %1 : vector<8x128xi32>
    %12 = arith.extui %11 : vector<8x128xi1> to vector<8x128xi32>
    %13 = arith.sitofp %12 : vector<8x128xi32> to vector<8x128xf32>
    %cst_6 = arith.constant dense<0.000000e+00> : vector<8x32xf32>
    %14 = tpu.matmul %13, %0, %cst_6 {dimension_numbers = #tpu.dot_dimension_numbers<[1], [0], [0], [1], [0, 0, 1, 1], [], []>, precision = #tpu.contract_precision<fp32>} : vector<8x128xf32>, vector<128x32xf32>, vector<8x32xf32> -> vector<8x32xf32>
    %c0_7 = arith.constant 0 : index
    %c32 = arith.constant 32 : index
    %15 = vector.load %arg3[%c0_7, %c32] : memref<8x128xf32, #tpu.memory_space<vmem>>, vector<8x32xf32>
    tpu.vector_store %arg3[%c0_7, %c32], %14 {strides = array<i32>} : memref<8x128xf32, #tpu.memory_space<vmem>>, vector<8x32xf32>,
    %c0_8 = arith.constant 0 : index
    %c2 = arith.constant 2 : index
    %16 = vector.load %arg1[%c0_8, %c2] : memref<8x4xi32, #tpu.memory_space<vmem>>, vector<8x1xi32>
    %17 = vector.broadcast %16 : vector<8x1xi32> to vector<8x128xi32>
    %18 = arith.cmpi eq, %17, %1 : vector<8x128xi32>
    %19 = arith.extui %18 : vector<8x128xi1> to vector<8x128xi32>
    %20 = arith.sitofp %19 : vector<8x128xi32> to vector<8x128xf32>
    %cst_9 = arith.constant dense<0.000000e+00> : vector<8x32xf32>
    %21 = tpu.matmul %20, %0, %cst_9 {dimension_numbers = #tpu.dot_dimension_numbers<[1], [0], [0], [1], [0, 0, 1, 1], [], []>, precision = #tpu.contract_precision<fp32>} : vector<8x128xf32>, vector<128x32xf32>, vector<8x32xf32> -> vector<8x32xf32>
    %c0_10 = arith.constant 0 : index
    %c64 = arith.constant 64 : index
    %22 = vector.load %arg3[%c0_10, %c64] : memref<8x128xf32, #tpu.memory_space<vmem>>, vector<8x32xf32>
    tpu.vector_store %arg3[%c0_10, %c64], %21 {strides = array<i32>} : memref<8x128xf32, #tpu.memory_space<vmem>>, vector<8x32xf32>,
    %c0_11 = arith.constant 0 : index
    %c3 = arith.constant 3 : index
    %23 = vector.load %arg1[%c0_11, %c3] : memref<8x4xi32, #tpu.memory_space<vmem>>, vector<8x1xi32>
    %24 = vector.broadcast %23 : vector<8x1xi32> to vector<8x128xi32>
    %25 = arith.cmpi eq, %24, %1 : vector<8x128xi32>
    %26 = arith.extui %25 : vector<8x128xi1> to vector<8x128xi32>
    %27 = arith.sitofp %26 : vector<8x128xi32> to vector<8x128xf32>
    %cst_12 = arith.constant dense<0.000000e+00> : vector<8x32xf32>
    %28 = tpu.matmul %27, %0, %cst_12 {dimension_numbers = #tpu.dot_dimension_numbers<[1], [0], [0], [1], [0, 0, 1, 1], [], []>, precision = #tpu.contract_precision<fp32>} : vector<8x128xf32>, vector<128x32xf32>, vector<8x32xf32> -> vector<8x32xf32>
    %c0_13 = arith.constant 0 : index
    %c96 = arith.constant 96 : index
    %29 = vector.load %arg3[%c0_13, %c96] : memref<8x128xf32, #tpu.memory_space<vmem>>, vector<8x32xf32>
    tpu.vector_store %arg3[%c0_13, %c96], %28 {strides = array<i32>} : memref<8x128xf32, #tpu.memory_space<vmem>>, vector<8x32xf32>,
    return
  }
  func.func @transform_0(%arg0: i32) -> (i32, i32) {
    %c0_i32 = arith.constant 0 : i32
    %c0_i32_0 = arith.constant 0 : i32
    return %arg0, %c0_i32 : i32, i32
  }
  func.func @transform_1(%arg0: i32) -> (i32, i32) {
    %c0_i32 = arith.constant 0 : i32
    %c0_i32_0 = arith.constant 0 : i32
    %c0_i32_1 = arith.constant 0 : i32
    return %c0_i32, %c0_i32_0 : i32, i32
  }
  func.func @transform_2(%arg0: i32) -> (i32, i32) {
    %c0_i32 = arith.constant 0 : i32
    %c0_i32_0 = arith.constant 0 : i32
    return %arg0, %c0_i32 : i32, i32
  }
}

</mosaic_0001>

<llo_original>
// kernel: feature_embedding.1
$region0: #{feature_embedding.1}
  #allocation0 [shape = 'u32[]', space=smem, size = 0x4, offset = 0x4, fixed_abs, tag = 'smem constant byte address 0x4 - core index']
  #allocation1 [shape = 'u32[144,128]{1,0:T(1,128)}', space=vmem, size = 0x12000, scoped, tag = 'internal scratch']
  %s0 = inlined_call_operand.vmem [shape: s32[8,4], index: 0, kind: input, shape index: {}]
  %s1 = inlined_call_operand.vmem [shape: f32[128,32], index: 1, kind: input, shape index: {}]
  %s2 = inlined_call_operand.vmem [shape: f32[8,128], index: 2, kind: output, shape index: {}]
  %s3 = sld [smem:[#allocation0]]
  $region18: #{feature_embedding.1} parent=0
    _
  %s5 = ssub.s32 1, %s3
  %s6 = scalar_select 0, %s5, %s3
  // Predicated region
  $region2: #{feature_embedding.1} parent=0 // pred_check
    _
  $region3: #{feature_embedding.1} parent=0 // pred_check_branch
    %8 = sbr.rel (0) target = $region5
  $region4: #{feature_embedding.1} parent=0 // pred_region
    _
  $region5: #{feature_embedding.1} parent=0 // pred_fallthru
    _
  // Predicated region
  $region6: #{feature_embedding.1} parent=0 // pred_check
    _
  $region7: #{feature_embedding.1} parent=0 // pred_check_branch
    %10 = sbr.rel (0) target = $region9
  $region8: #{feature_embedding.1} parent=0 // pred_region
    _
  $region9: #{feature_embedding.1} parent=0 // pred_fallthru
    _
  %v11 = vld [vmem:[%s1] sm:$0xff]
  %v12 = vld [vmem:[%s1 + $0x8] sm:$0xff]
  %v13 = vld [vmem:[%s1 + $0x10] sm:$0xff]
  %v14 = vld [vmem:[%s1 + $0x18] sm:$0xff]
  %v15 = vld [vmem:[%s1 + $0x20] sm:$0xff]
  %v16 = vld [vmem:[%s1 + $0x28] sm:$0xff]
  %v17 = vld [vmem:[%s1 + $0x30] sm:$0xff]
  %v18 = vld [vmem:[%s1 + $0x38] sm:$0xff]
  %v19 = vld [vmem:[%s1 + $0x40] sm:$0xff]
  %v20 = vld [vmem:[%s1 + $0x48] sm:$0xff]
  %v21 = vld [vmem:[%s1 + $0x50] sm:$0xff]
  %v22 = vld [vmem:[%s1 + $0x58] sm:$0xff]
  %v23 = vld [vmem:[%s1 + $0x60] sm:$0xff]
  %v24 = vld [vmem:[%s1 + $0x68] sm:$0xff]
  %v25 = vld [vmem:[%s1 + $0x70] sm:$0xff]
  %v26 = vld [vmem:[%s1 + $0x78] sm:$0xff]
  %v27 = vlaneseq
  %v28 = vand.u32 %v27, 127
  %v29 = vld [vmem:[%s0] sm:$0xff]
  %30 = vset.pattern.permute.xlu0 0
  %31 = vperm.xlu0 %30, %v29
  %v32 = vpop.permute.xlu0 %31
  %vm33 = vcmp.eq.s32.totalorder %v32, %v28
  %v34 = vsel %vm33, 1, 0
  %v35 = vcvt.s32.f32 %v34
  %36 = vmatprep.subr.mxu0 0.0
  %v37 = vand.u32 %v11, 4294901760
  %38 = vmatpush1.msra.mxu0 %v37
  %39 = vmatprep.subr.mxu0 0.0
  %v40 = vand.u32 %v12, 4294901760
  %41 = vmatpush1.msra.mxu0 %v40
  %42 = vmatprep.subr.mxu0 0.0
  %v43 = vand.u32 %v13, 4294901760
  %44 = vmatpush1.msra.mxu0 %v43
  %45 = vmatprep.subr.mxu0 0.0
  %v46 = vand.u32 %v14, 4294901760
  %47 = vmatpush1.msra.mxu0 %v46
  %48 = vmatprep.subr.mxu0 0.0
  %v49 = vand.u32 %v15, 4294901760
  %50 = vmatpush1.msra.mxu0 %v49
  %51 = vmatprep.subr.mxu0 0.0
  %v52 = vand.u32 %v16, 4294901760
  %53 = vmatpush1.msra.mxu0 %v52
  %54 = vmatprep.subr.mxu0 0.0
  %v55 = vand.u32 %v17, 4294901760
  %56 = vmatpush1.msra.mxu0 %v55
  %57 = vmatprep.subr.mxu0 0.0
  %v58 = vand.u32 %v18, 4294901760
  %59 = vmatpush1.msra.mxu0 %v58
  %60 = vmatprep.subr.mxu0 0.0
  %v61 = vand.u32 %v19, 4294901760
  %62 = vmatpush1.msra.mxu0 %v61
  %63 = vmatprep.subr.mxu0 0.0
  %v64 = vand.u32 %v20, 4294901760
  %65 = vmatpush1.msra.mxu0 %v64
  %66 = vmatprep.subr.mxu0 0.0
  %v67 = vand.u32 %v21, 4294901760
  %68 = vmatpush1.msra.mxu0 %v67
  %69 = vmatprep.subr.mxu0 0.0
  %v70 = vand.u32 %v22, 4294901760
  %71 = vmatpush1.msra.mxu0 %v70
  %72 = vmatprep.subr.mxu0 0.0
  %v73 = vand.u32 %v23, 4294901760
  %74 = vmatpush1.msra.mxu0 %v73
  %75 = vmatprep.subr.mxu0 0.0
  %v76 = vand.u32 %v24, 4294901760
  %77 = vmatpush1.msra.mxu0 %v76
  %78 = vmatprep.subr.mxu0 0.0
  %v79 = vand.u32 %v25, 4294901760
  %80 = vmatpush1.msra.mxu0 %v79
  %81 = vmatprep.subr.mxu0 0.0
  %v82 = vand.u32 %v26, 4294901760
  %83 = vmatpush1.msra.mxu0 %v82
  %84 = vmatprep.subr.mxu0 0.0
  %85 = vmatpush1.msra.mxu0 0.0
  %86 = vmatprep.subr.mxu0 0.0
  %87 = vmatpush1.msra.mxu0 0.0
  %88 = vmatprep.subr.mxu0 0.0
  %89 = vmatpush1.msra.mxu0 0.0
  %90 = vmatprep.subr.mxu0 0.0
  %91 = vmatpush1.msra.mxu0 0.0
  %92 = vmatprep.subr.mxu0 0.0
  %93 = vmatpush1.msra.mxu0 0.0
  %94 = vmatprep.subr.mxu0 0.0
  %95 = vmatpush1.msra.mxu0 0.0
  %96 = vmatprep.subr.mxu0 0.0
  %97 = vmatpush1.msra.mxu0 0.0
  %98 = vmatprep.subr.mxu0 0.0
  %99 = vmatpush1.msra.mxu0 0.0
  %100 = vmatprep.subr.mxu0 0.0
  %101 = vmatpush1.msra.mxu0 0.0
  %102 = vmatprep.subr.mxu0 0.0
  %103 = vmatpush1.msra.mxu0 0.0
  %104 = vmatprep.subr.mxu0 0.0
  %105 = vmatpush1.msra.mxu0 0.0
  %106 = vmatprep.subr.mxu0 0.0
  %107 = vmatpush1.msra.mxu0 0.0
  %108 = vmatprep.subr.mxu0 0.0
  %109 = vmatpush1.msra.mxu0 0.0
  %110 = vmatprep.subr.mxu0 0.0
  %111 = vmatpush1.msra.mxu0 0.0
  %112 = vmatprep.subr.mxu0 0.0
  %113 = vmatpush1.msra.mxu0 0.0
  %114 = vmatprep.subr.mxu0 0.0
  %115 = vmatpush1.msra.mxu0 0.0
  %116 = vmatprep.mubr.f32.mxu0 0.0
  %v117 = vand.u32 %v35, 4294901760
  %v118 = vsub.f32 %v35, %v117
  %v119 = vand.u32 %v118, 4294901760
  %v120 = vsub.f32 %v118, %v119
  %v121 = vand.u32 %v120, 4294901760
  %122 = vmatmul.mubr.f32.gmra.mrb[0].mxu0 %v121
  %v123 = vpop.f32.mrb[0].mxu0
  %v124 = vadd.f32 0.0, %v123
  %v125 = vpop.f32.mrb[0].mxu0
  %126 = vdwg.mxu0
  %127 = vmatprep.subr.mxu0 0.0
  %v128 = vand.u32 %v11, 4294901760
  %v129 = vsub.f32 %v11, %v128
  %v130 = vand.u32 %v129, 4294901760
  %v131 = vsub.f32 %v129, %v130
  %v132 = vand.u32 %v131, 4294901760
  %133 = vmatpush1.msra.mxu0 %v132
  %134 = vmatprep.subr.mxu0 0.0
  %v135 = vand.u32 %v12, 4294901760
  %v136 = vsub.f32 %v12, %v135
  %v137 = vand.u32 %v136, 4294901760
  %v138 = vsub.f32 %v136, %v137
  %v139 = vand.u32 %v138, 4294901760
  %140 = vmatpush1.msra.mxu0 %v139
  %141 = vmatprep.subr.mxu0 0.0
  %v142 = vand.u32 %v13, 4294901760
  %v143 = vsub.f32 %v13, %v142
  %v144 = vand.u32 %v143, 4294901760
  %v145 = vsub.f32 %v143, %v144
  %v146 = vand.u32 %v145, 4294901760
  %147 = vmatpush1.msra.mxu0 %v146
  %148 = vmatprep.subr.mxu0 0.0
  %v149 = vand.u32 %v14, 4294901760
  %v150 = vsub.f32 %v14, %v149
  %v151 = vand.u32 %v150, 4294901760
  %v152 = vsub.f32 %v150, %v151
  %v153 = vand.u32 %v152, 4294901760
  %154 = vmatpush1.msra.mxu0 %v153
  %155 = vmatprep.subr.mxu0 0.0
  %v156 = vand.u32 %v15, 4294901760
  %v157 = vsub.f32 %v15, %v156
  %v158 = vand.u32 %v157, 4294901760
  %v159 = vsub.f32 %v157, %v158
  %v160 = vand.u32 %v159, 4294901760
  %161 = vmatpush1.msra.mxu0 %v160
  %162 = vmatprep.subr.mxu0 0.0
  %v163 = vand.u32 %v16, 4294901760
  %v164 = vsub.f32 %v16, %v163
  %v165 = vand.u32 %v164, 4294901760
  %v166 = vsub.f32 %v164, %v165
  %v167 = vand.u32 %v166, 4294901760
  %168 = vmatpush1.msra.mxu0 %v167
  %169 = vmatprep.subr.mxu0 0.0
  %v170 = vand.u32 %v17, 4294901760
  %v171 = vsub.f32 %v17, %v170
  %v172 = vand.u32 %v171, 4294901760
  %v173 = vsub.f32 %v171, %v172
  %v174 = vand.u32 %v173, 4294901760
  %175 = vmatpush1.msra.mxu0 %v174
  %176 = vmatprep.subr.mxu0 0.0
  %v177 = vand.u32 %v18, 4294901760
  %v178 = vsub.f32 %v18, %v177
  %v179 = vand.u32 %v178, 4294901760
  %v180 = vsub.f32 %v178, %v179
  %v181 = vand.u32 %v180, 4294901760
  %182 = vmatpush1.msra.mxu0 %v181
  %183 = vmatprep.subr.mxu0 0.0
  %v184 = vand.u32 %v19, 4294901760
  %v185 = vsub.f32 %v19, %v184
  %v186 = vand.u32 %v185, 4294901760
  %v187 = vsub.f32 %v185, %v186
  %v188 = vand.u32 %v187, 4294901760
  %189 = vmatpush1.msra.mxu0 %v188
  %190 = vmatprep.subr.mxu0 0.0
  %v191 = vand.u32 %v20, 4294901760
  %v192 = vsub.f32 %v20, %v191
  %v193 = vand.u32 %v192, 4294901760
  %v194 = vsub.f32 %v192, %v193
  %v195 = vand.u32 %v194, 4294901760
  %196 = vmatpush1.msra.mxu0 %v195
  %197 = vmatprep.subr.mxu0 0.0
  %v198 = vand.u32 %v21, 4294901760
  %v199 = vsub.f32 %v21, %v198
  %v200 = vand.u32 %v199, 4294901760
  %v201 = vsub.f32 %v199, %v200
  %v202 = vand.u32 %v201, 4294901760
  %203 = vmatpush1.msra.mxu0 %v202
  %204 = vmatprep.subr.mxu0 0.0
  %v205 = vand.u32 %v22, 4294901760
  %v206 = vsub.f32 %v22, %v205
  %v207 = vand.u32 %v206, 4294901760
  %v208 = vsub.f32 %v206, %v207
  %v209 = vand.u32 %v208, 4294901760
  %210 = vmatpush1.msra.mxu0 %v209
  %211 = vmatprep.subr.mxu0 0.0
  %v212 = vand.u32 %v23, 4294901760
  %v213 = vsub.f32 %v23, %v212
  %v214 = vand.u32 %v213, 4294901760
  %v215 = vsub.f32 %v213, %v214
  %v216 = vand.u32 %v215, 4294901760
  %217 = vmatpush1.msra.mxu0 %v216
  %218 = vmatprep.subr.mxu0 0.0
  %v219 = vand.u32 %v24, 4294901760
  %v220 = vsub.f32 %v24, %v219
  %v221 = vand.u32 %v220, 4294901760
  %v222 = vsub.f32 %v220, %v221
  %v223 = vand.u32 %v222, 4294901760
  %224 = vmatpush1.msra.mxu0 %v223
  %225 = vmatprep.subr.mxu0 0.0
  %v226 = vand.u32 %v25, 4294901760
  %v227 = vsub.f32 %v25, %v226
  %v228 = vand.u32 %v227, 4294901760
  %v229 = vsub.f32 %v227, %v228
  %v230 = vand.u32 %v229, 4294901760
  %231 = vmatpush1.msra.mxu0 %v230
  %232 = vmatprep.subr.mxu0 0.0
  %v233 = vand.u32 %v26, 4294901760
  %v234 = vsub.f32 %v26, %v233
  %v235 = vand.u32 %v234, 4294901760
  %v236 = vsub.f32 %v234, %v235
  %v237 = vand.u32 %v236, 4294901760
  %238 = vmatpush1.msra.mxu0 %v237
  %239 = vmatprep.subr.mxu0 0.0
  %240 = vmatpush1.msra.mxu0 0.0
  %241 = vmatprep.subr.mxu0 0.0
  %242 = vmatpush1.msra.mxu0 0.0
  %243 = vmatprep.subr.mxu0 0.0
  %244 = vmatpush1.msra.mxu0 0.0
  %245 = vmatprep.subr.mxu0 0.0
  %246 = vmatpush1.msra.mxu0 0.0
  %247 = vmatprep.subr.mxu0 0.0
  %248 = vmatpush1.msra.mxu0 0.0
  %249 = vmatprep.subr.mxu0 0.0
  %250 = vmatpush1.msra.mxu0 0.0
  %251 = vmatprep.subr.mxu0 0.0
  %252 = vmatpush1.msra.mxu0 0.0
  %253 = vmatprep.subr.mxu0 0.0
  %254 = vmatpush1.msra.mxu0 0.0
  %255 = vmatprep.subr.mxu0 0.0
  %256 = vmatpush1.msra.mxu0 0.0
  %257 = vmatprep.subr.mxu0 0.0
  %258 = vmatpush1.msra.mxu0 0.0
  %259 = vmatprep.subr.mxu0 0.0
  %260 = vmatpush1.msra.mxu0 0.0
  %261 = vmatprep.subr.mxu0 0.0
  %262 = vmatpush1.msra.mxu0 0.0
  %263 = vmatprep.subr.mxu0 0.0
  %264 = vmatpush1.msra.mxu0 0.0
  %265 = vmatprep.subr.mxu0 0.0
  %266 = vmatpush1.msra.mxu0 0.0
  %267 = vmatprep.subr.mxu0 0.0
  %268 = vmatpush1.msra.mxu0 0.0
  %269 = vmatprep.subr.mxu0 0.0
  %270 = vmatpush1.msra.mxu0 0.0
  %271 = vmatprep.mubr.f32.mxu0 0.0
  %v272 = vand.u32 %v35, 4294901760
  %273 = vmatmul.mubr.f32.gmra.mrb[0].mxu0 %v272
  %v274 = vpop.f32.mrb[0].mxu0
  %v275 = vadd.f32 %v124, %v274
  %v276 = vpop.f32.mrb[0].mxu0
  %277 = vdwg.mxu0
  %278 = vmatprep.subr.mxu0 0.0
  %v279 = vand.u32 %v11, 4294901760
  %v280 = vsub.f32 %v11, %v279
  %281 = vmatpush1.msra.mxu0 %v280
  %282 = vmatprep.subr.mxu0 0.0
  %v283 = vand.u32 %v12, 4294901760
  %v284 = vsub.f32 %v12, %v283
  %285 = vmatpush1.msra.mxu0 %v284
  %286 = vmatprep.subr.mxu0 0.0
  %v287 = vand.u32 %v13, 4294901760
  %v288 = vsub.f32 %v13, %v287
  %289 = vmatpush1.msra.mxu0 %v288
  %290 = vmatprep.subr.mxu0 0.0
  %v291 = vand.u32 %v14, 4294901760
  %v292 = vsub.f32 %v14, %v291
  %293 = vmatpush1.msra.mxu0 %v292
  %294 = vmatprep.subr.mxu0 0.0
  %v295 = vand.u32 %v15, 4294901760
  %v296 = vsub.f32 %v15, %v295
  %297 = vmatpush1.msra.mxu0 %v296
  %298 = vmatprep.subr.mxu0 0.0
  %v299 = vand.u32 %v16, 4294901760
  %v300 = vsub.f32 %v16, %v299
  %301 = vmatpush1.msra.mxu0 %v300
  %302 = vmatprep.subr.mxu0 0.0
  %v303 = vand.u32 %v17, 4294901760
  %v304 = vsub.f32 %v17, %v303
  %305 = vmatpush1.msra.mxu0 %v304
  %306 = vmatprep.subr.mxu0 0.0
  %v307 = vand.u32 %v18, 4294901760
  %v308 = vsub.f32 %v18, %v307
  %309 = vmatpush1.msra.mxu0 %v308
  %310 = vmatprep.subr.mxu0 0.0
  %v311 = vand.u32 %v19, 4294901760
  %v312 = vsub.f32 %v19, %v311
  %313 = vmatpush1.msra.mxu0 %v312
  %314 = vmatprep.subr.mxu0 0.0
  %v315 = vand.u32 %v20, 4294901760
  %v316 = vsub.f32 %v20, %v315
  %317 = vmatpush1.msra.mxu0 %v316
  %318 = vmatprep.subr.mxu0 0.0
  %v319 = vand.u32 %v21, 4294901760
  %v320 = vsub.f32 %v21, %v319
  %321 = vmatpush1.msra.mxu0 %v320
  %322 = vmatprep.subr.mxu0 0.0
  %v323 = vand.u32 %v22, 4294901760
  %v324 = vsub.f32 %v22, %v323
  %325 = vmatpush1.msra.mxu0 %v324
  %326 = vmatprep.subr.mxu0 0.0
  %v327 = vand.u32 %v23, 4294901760
  %v328 = vsub.f32 %v23, %v327
  %329 = vmatpush1.msra.mxu0 %v328
  %330 = vmatprep.subr.mxu0 0.0
  %v331 = vand.u32 %v24, 4294901760
  %v332 = vsub.f32 %v24, %v331
  %333 = vmatpush1.msra.mxu0 %v332
  %334 = vmatprep.subr.mxu0 0.0
  %v335 = vand.u32 %v25, 4294901760
  %v336 = vsub.f32 %v25, %v335
  %337 = vmatpush1.msra.mxu0 %v336
  %338 = vmatprep.subr.mxu0 0.0
  %v339 = vand.u32 %v26, 4294901760
  %v340 = vsub.f32 %v26, %v339
  %341 = vmatpush1.msra.mxu0 %v340
  %342 = vmatprep.subr.mxu0 0.0
  %343 = vmatpush1.msra.mxu0 0.0
  %344 = vmatprep.subr.mxu0 0.0
  %345 = vmatpush1.msra.mxu0 0.0
  %346 = vmatprep.subr.mxu0 0.0
  %347 = vmatpush1.msra.mxu0 0.0
  %348 = vmatprep.subr.mxu0 0.0
  %349 = vmatpush1.msra.mxu0 0.0
  %350 = vmatprep.subr.mxu0 0.0
  %351 = vmatpush1.msra.mxu0 0.0
  %352 = vmatprep.subr.mxu0 0.0
  %353 = vmatpush1.msra.mxu0 0.0
  %354 = vmatprep.subr.mxu0 0.0
  %355 = vmatpush1.msra.mxu0 0.0
  %356 = vmatprep.subr.mxu0 0.0
  %357 = vmatpush1.msra.mxu0 0.0
  %358 = vmatprep.subr.mxu0 0.0
  %359 = vmatpush1.msra.mxu0 0.0
  %360 = vmatprep.subr.mxu0 0.0
  %361 = vmatpush1.msra.mxu0 0.0
  %362 = vmatprep.subr.mxu0 0.0
  %363 = vmatpush1.msra.mxu0 0.0
  %364 = vmatprep.subr.mxu0 0.0
  %365 = vmatpush1.msra.mxu0 0.0
  %366 = vmatprep.subr.mxu0 0.0
  %367 = vmatpush1.msra.mxu0 0.0
  %368 = vmatprep.subr.mxu0 0.0
  %369 = vmatpush1.msra.mxu0 0.0
  %370 = vmatprep.subr.mxu0 0.0
  %371 = vmatpush1.msra.mxu0 0.0
  %372 = vmatprep.subr.mxu0 0.0
  %373 = vmatpush1.msra.mxu0 0.0
  %374 = vmatprep.mubr.f32.mxu0 0.0
  %v375 = vand.u32 %v35, 4294901760
  %v376 = vsub.f32 %v35, %v375
  %377 = vmatmul.mubr.f32.gmra.mrb[0].mxu0 %v376
  %v378 = vpop.f32.mrb[0].mxu0
  %v379 = vadd.f32 %v275, %v378
  %v380 = vpop.f32.mrb[0].mxu0
  %381 = vdwg.mxu0
  %382 = vmatprep.subr.mxu0 0.0
  %v383 = vand.u32 %v11, 4294901760
  %384 = vmatpush1.msra.mxu0 %v383
  %385 = vmatprep.subr.mxu0 0.0
  %v386 = vand.u32 %v12, 4294901760
  %387 = vmatpush1.msra.mxu0 %v386
  %388 = vmatprep.subr.mxu0 0.0
  %v389 = vand.u32 %v13, 4294901760
  %390 = vmatpush1.msra.mxu0 %v389
  %391 = vmatprep.subr.mxu0 0.0
  %v392 = vand.u32 %v14, 4294901760
  %393 = vmatpush1.msra.mxu0 %v392
  %394 = vmatprep.subr.mxu0 0.0
  %v395 = vand.u32 %v15, 4294901760
  %396 = vmatpush1.msra.mxu0 %v395
  %397 = vmatprep.subr.mxu0 0.0
  %v398 = vand.u32 %v16, 4294901760
  %399 = vmatpush1.msra.mxu0 %v398
  %400 = vmatprep.subr.mxu0 0.0
  %v401 = vand.u32 %v17, 4294901760
  %402 = vmatpush1.msra.mxu0 %v401
  %403 = vmatprep.subr.mxu0 0.0
  %v404 = vand.u32 %v18, 4294901760
  %405 = vmatpush1.msra.mxu0 %v404
  %406 = vmatprep.subr.mxu0 0.0
  %v407 = vand.u32 %v19, 4294901760
  %408 = vmatpush1.msra.mxu0 %v407
  %409 = vmatprep.subr.mxu0 0.0
  %v410 = vand.u32 %v20, 4294901760
  %411 = vmatpush1.msra.mxu0 %v410
  %412 = vmatprep.subr.mxu0 0.0
  %v413 = vand.u32 %v21, 4294901760
  %414 = vmatpush1.msra.mxu0 %v413
  %415 = vmatprep.subr.mxu0 0.0
  %v416 = vand.u32 %v22, 4294901760
  %417 = vmatpush1.msra.mxu0 %v416
  %418 = vmatprep.subr.mxu0 0.0
  %v419 = vand.u32 %v23, 4294901760
  %420 = vmatpush1.msra.mxu0 %v419
  %421 = vmatprep.subr.mxu0 0.0
  %v422 = vand.u32 %v24, 4294901760
  %423 = vmatpush1.msra.mxu0 %v422
  %424 = vmatprep.subr.mxu0 0.0
  %v425 = vand.u32 %v25, 4294901760
  %426 = vmatpush1.msra.mxu0 %v425
  %427 = vmatprep.subr.mxu0 0.0
  %v428 = vand.u32 %v26, 4294901760
  %429 = vmatpush1.msra.mxu0 %v428
  %430 = vmatprep.subr.mxu0 0.0
  %431 = vmatpush1.msra.mxu0 0.0
  %432 = vmatprep.subr.mxu0 0.0
  %433 = vmatpush1.msra.mxu0 0.0
  %434 = vmatprep.subr.mxu0 0.0
  %435 = vmatpush1.msra.mxu0 0.0
  %436 = vmatprep.subr.mxu0 0.0
  %437 = vmatpush1.msra.mxu0 0.0
  %438 = vmatprep.subr.mxu0 0.0
  %439 = vmatpush1.msra.mxu0 0.0
  %440 = vmatprep.subr.mxu0 0.0
  %441 = vmatpush1.msra.mxu0 0.0
  %442 = vmatprep.subr.mxu0 0.0
  %443 = vmatpush1.msra.mxu0 0.0
  %444 = vmatprep.subr.mxu0 0.0
  %445 = vmatpush1.msra.mxu0 0.0
  %446 = vmatprep.subr.mxu0 0.0
  %447 = vmatpush1.msra.mxu0 0.0
  %448 = vmatprep.subr.mxu0 0.0
  %449 = vmatpush1.msra.mxu0 0.0
  %450 = vmatprep.subr.mxu0 0.0
  %451 = vmatpush1.msra.mxu0 0.0
  %452 = vmatprep.subr.mxu0 0.0
  %453 = vmatpush1.msra.mxu0 0.0
  %454 = vmatprep.subr.mxu0 0.0
  %455 = vmatpush1.msra.mxu0 0.0
  %456 = vmatprep.subr.mxu0 0.0
  %457 = vmatpush1.msra.mxu0 0.0
  %458 = vmatprep.subr.mxu0 0.0
  %459 = vmatpush1.msra.mxu0 0.0
  %460 = vmatprep.subr.mxu0 0.0
  %461 = vmatpush1.msra.mxu0 0.0
  %462 = vmatprep.mubr.f32.mxu0 0.0
  %v463 = vand.u32 %v35, 4294901760
  %v464 = vsub.f32 %v35, %v463
  %v465 = vand.u32 %v464, 4294901760
  %466 = vmatmul.mubr.f32.gmra.mrb[0].mxu0 %v465
  %v467 = vpop.f32.mrb[0].mxu0
  %v468 = vadd.f32 %v379, %v467
  %v469 = vpop.f32.mrb[0].mxu0
  %470 = vdwg.mxu0
  %471 = vmatprep.subr.mxu0 0.0
  %v472 = vand.u32 %v11, 4294901760
  %v473 = vsub.f32 %v11, %v472
  %v474 = vand.u32 %v473, 4294901760
  %475 = vmatpush1.msra.mxu0 %v474
  %476 = vmatprep.subr.mxu0 0.0
  %v477 = vand.u32 %v12, 4294901760
  %v478 = vsub.f32 %v12, %v477
  %v479 = vand.u32 %v478, 4294901760
  %480 = vmatpush1.msra.mxu0 %v479
  %481 = vmatprep.subr.mxu0 0.0
  %v482 = vand.u32 %v13, 4294901760
  %v483 = vsub.f32 %v13, %v482
  %v484 = vand.u32 %v483, 4294901760
  %485 = vmatpush1.msra.mxu0 %v484
  %486 = vmatprep.subr.mxu0 0.0
  %v487 = vand.u32 %v14, 4294901760
  %v488 = vsub.f32 %v14, %v487
  %v489 = vand.u32 %v488, 4294901760
  %490 = vmatpush1.msra.mxu0 %v489
  %491 = vmatprep.subr.mxu0 0.0
  %v492 = vand.u32 %v15, 4294901760
  %v493 = vsub.f32 %v15, %v492
  %v494 = vand.u32 %v493, 4294901760
  %495 = vmatpush1.msra.mxu0 %v494
  %496 = vmatprep.subr.mxu0 0.0
  %v497 = vand.u32 %v16, 4294901760
  %v498 = vsub.f32 %v16, %v497
  %v499 = vand.u32 %v498, 4294901760
  %500 = vmatpush1.msra.mxu0 %v499
  %501 = vmatprep.subr.mxu0 0.0
  %v502 = vand.u32 %v17, 4294901760
  %v503 = vsub.f32 %v17, %v502
  %v504 = vand.u32 %v503, 4294901760
  %505 = vmatpush1.msra.mxu0 %v504
  %506 = vmatprep.subr.mxu0 0.0
  %v507 = vand.u32 %v18, 4294901760
  %v508 = vsub.f32 %v18, %v507
  %v509 = vand.u32 %v508, 4294901760
  %510 = vmatpush1.msra.mxu0 %v509
  %511 = vmatprep.subr.mxu0 0.0
  %v512 = vand.u32 %v19, 4294901760
  %v513 = vsub.f32 %v19, %v512
  %v514 = vand.u32 %v513, 4294901760
  %515 = vmatpush1.msra.mxu0 %v514
  %516 = vmatprep.subr.mxu0 0.0
  %v517 = vand.u32 %v20, 4294901760
  %v518 = vsub.f32 %v20, %v517
  %v519 = vand.u32 %v518, 4294901760
  %520 = vmatpush1.msra.mxu0 %v519
  %521 = vmatprep.subr.mxu0 0.0
  %v522 = vand.u32 %v21, 4294901760
  %v523 = vsub.f32 %v21, %v522
  %v524 = vand.u32 %v523, 4294901760
  %525 = vmatpush1.msra.mxu0 %v524
  %526 = vmatprep.subr.mxu0 0.0
  %v527 = vand.u32 %v22, 4294901760
  %v528 = vsub.f32 %v22, %v527
  %v529 = vand.u32 %v528, 4294901760
  %530 = vmatpush1.msra.mxu0 %v529
  %531 = vmatprep.subr.mxu0 0.0
  %v532 = vand.u32 %v23, 4294901760
  %v533 = vsub.f32 %v23, %v532
  %v534 = vand.u32 %v533, 4294901760
  %535 = vmatpush1.msra.mxu0 %v534
  %536 = vmatprep.subr.mxu0 0.0
  %v537 = vand.u32 %v24, 4294901760
  %v538 = vsub.f32 %v24, %v537
  %v539 = vand.u32 %v538, 4294901760
  %540 = vmatpush1.msra.mxu0 %v539
  %541 = vmatprep.subr.mxu0 0.0
  %v542 = vand.u32 %v25, 4294901760
  %v543 = vsub.f32 %v25, %v542
  %v544 = vand.u32 %v543, 4294901760
  %545 = vmatpush1.msra.mxu0 %v544
  %546 = vmatprep.subr.mxu0 0.0
  %v547 = vand.u32 %v26, 4294901760
  %v548 = vsub.f32 %v26, %v547
  %v549 = vand.u32 %v548, 4294901760
  %550 = vmatpush1.msra.mxu0 %v549
  %551 = vmatprep.subr.mxu0 0.0
  %552 = vmatpush1.msra.mxu0 0.0
  %553 = vmatprep.subr.mxu0 0.0
  %554 = vmatpush1.msra.mxu0 0.0
  %555 = vmatprep.subr.mxu0 0.0
  %556 = vmatpush1.msra.mxu0 0.0
  %557 = vmatprep.subr.mxu0 0.0
  %558 = vmatpush1.msra.mxu0 0.0
  %559 = vmatprep.subr.mxu0 0.0
  %560 = vmatpush1.msra.mxu0 0.0
  %561 = vmatprep.subr.mxu0 0.0
  %562 = vmatpush1.msra.mxu0 0.0
  %563 = vmatprep.subr.mxu0 0.0
  %564 = vmatpush1.msra.mxu0 0.0
  %565 = vmatprep.subr.mxu0 0.0
  %566 = vmatpush1.msra.mxu0 0.0
  %567 = vmatprep.subr.mxu0 0.0
  %568 = vmatpush1.msra.mxu0 0.0
  %569 = vmatprep.subr.mxu0 0.0
  %570 = vmatpush1.msra.mxu0 0.0
  %571 = vmatprep.subr.mxu0 0.0
  %572 = vmatpush1.msra.mxu0 0.0
  %573 = vmatprep.subr.mxu0 0.0
  %574 = vmatpush1.msra.mxu0 0.0
  %575 = vmatprep.subr.mxu0 0.0
  %576 = vmatpush1.msra.mxu0 0.0
  %577 = vmatprep.subr.mxu0 0.0
  %578 = vmatpush1.msra.mxu0 0.0
  %579 = vmatprep.subr.mxu0 0.0
  %580 = vmatpush1.msra.mxu0 0.0
  %581 = vmatprep.subr.mxu0 0.0
  %582 = vmatpush1.msra.mxu0 0.0
  %583 = vmatprep.mubr.f32.mxu0 0.0
  %v584 = vand.u32 %v35, 4294901760
  %585 = vmatmul.mubr.f32.gmra.mrb[0].mxu0 %v584
  %v586 = vpop.f32.mrb[0].mxu0
  %v587 = vadd.f32 %v468, %v586
  %v588 = vpop.f32.mrb[0].mxu0
  %589 = vdwg.mxu0
  %590 = vmatprep.subr.mxu0 0.0
  %v591 = vand.u32 %v11, 4294901760
  %592 = vmatpush1.msra.mxu0 %v591
  %593 = vmatprep.subr.mxu0 0.0
  %v594 = vand.u32 %v12, 4294901760
  %595 = vmatpush1.msra.mxu0 %v594
  %596 = vmatprep.subr.mxu0 0.0
  %v597 = vand.u32 %v13, 4294901760
  %598 = vmatpush1.msra.mxu0 %v597
  %599 = vmatprep.subr.mxu0 0.0
  %v600 = vand.u32 %v14, 4294901760
  %601 = vmatpush1.msra.mxu0 %v600
  %602 = vmatprep.subr.mxu0 0.0
  %v603 = vand.u32 %v15, 4294901760
  %604 = vmatpush1.msra.mxu0 %v603
  %605 = vmatprep.subr.mxu0 0.0
  %v606 = vand.u32 %v16, 4294901760
  %607 = vmatpush1.msra.mxu0 %v606
  %608 = vmatprep.subr.mxu0 0.0
  %v609 = vand.u32 %v17, 4294901760
  %610 = vmatpush1.msra.mxu0 %v609
  %611 = vmatprep.subr.mxu0 0.0
  %v612 = vand.u32 %v18, 4294901760
  %613 = vmatpush1.msra.mxu0 %v612
  %614 = vmatprep.subr.mxu0 0.0
  %v615 = vand.u32 %v19, 4294901760
  %616 = vmatpush1.msra.mxu0 %v615
  %617 = vmatprep.subr.mxu0 0.0
  %v618 = vand.u32 %v20, 4294901760
  %619 = vmatpush1.msra.mxu0 %v618
  %620 = vmatprep.subr.mxu0 0.0
  %v621 = vand.u32 %v21, 4294901760
  %622 = vmatpush1.msra.mxu0 %v621
  %623 = vmatprep.subr.mxu0 0.0
  %v624 = vand.u32 %v22, 4294901760
  %625 = vmatpush1.msra.mxu0 %v624
  %626 = vmatprep.subr.mxu0 0.0
  %v627 = vand.u32 %v23, 4294901760
  %628 = vmatpush1.msra.mxu0 %v627
  %629 = vmatprep.subr.mxu0 0.0
  %v630 = vand.u32 %v24, 4294901760
  %631 = vmatpush1.msra.mxu0 %v630
  %632 = vmatprep.subr.mxu0 0.0
  %v633 = vand.u32 %v25, 4294901760
  %634 = vmatpush1.msra.mxu0 %v633
  %635 = vmatprep.subr.mxu0 0.0
  %v636 = vand.u32 %v26, 4294901760
  %637 = vmatpush1.msra.mxu0 %v636
  %638 = vmatprep.subr.mxu0 0.0
  %639 = vmatpush1.msra.mxu0 0.0
  %640 = vmatprep.subr.mxu0 0.0
  %641 = vmatpush1.msra.mxu0 0.0
  %642 = vmatprep.subr.mxu0 0.0
  %643 = vmatpush1.msra.mxu0 0.0
  %644 = vmatprep.subr.mxu0 0.0
  %645 = vmatpush1.msra.mxu0 0.0
  %646 = vmatprep.subr.mxu0 0.0
  %647 = vmatpush1.msra.mxu0 0.0
  %648 = vmatprep.subr.mxu0 0.0
  %649 = vmatpush1.msra.mxu0 0.0
  %650 = vmatprep.subr.mxu0 0.0
  %651 = vmatpush1.msra.mxu0 0.0
  %652 = vmatprep.subr.mxu0 0.0
  %653 = vmatpush1.msra.mxu0 0.0
  %654 = vmatprep.subr.mxu0 0.0
  %655 = vmatpush1.msra.mxu0 0.0
  %656 = vmatprep.subr.mxu0 0.0
  %657 = vmatpush1.msra.mxu0 0.0
  %658 = vmatprep.subr.mxu0 0.0
  %659 = vmatpush1.msra.mxu0 0.0
  %660 = vmatprep.subr.mxu0 0.0
  %661 = vmatpush1.msra.mxu0 0.0
  %662 = vmatprep.subr.mxu0 0.0
  %663 = vmatpush1.msra.mxu0 0.0
  %664 = vmatprep.subr.mxu0 0.0
  %665 = vmatpush1.msra.mxu0 0.0
  %666 = vmatprep.subr.mxu0 0.0
  %667 = vmatpush1.msra.mxu0 0.0
  %668 = vmatprep.subr.mxu0 0.0
  %669 = vmatpush1.msra.mxu0 0.0
  %670 = vmatprep.mubr.f32.mxu0 0.0
  %v671 = vand.u32 %v35, 4294901760
  %672 = vmatmul.mubr.f32.gmra.mrb[0].mxu0 %v671
  %v673 = vpop.f32.mrb[0].mxu0
  %v674 = vadd.f32 %v587, %v673
  %v675 = vpop.f32.mrb[0].mxu0
  %676 = vdwg.mxu0
  %vm677 = vcmask 261120
  %678 = vst.msk [vmem:[%s2] sm:$0xff] %vm677, %v674
  %v679 = vld [vmem:[%s0] sm:$0xff]
  %680 = vset.pattern.permute.xlu0 1
  %681 = vperm.xlu0 %680, %v679
  %v682 = vpop.permute.xlu0 %681
  %vm683 = vcmp.eq.s32.totalorder %v682, %v28
  %v684 = vsel %vm683, 1, 0
  %v685 = vcvt.s32.f32 %v684
  %686 = vmatprep.subr.mxu0 0.0
  %v687 = vand.u32 %v11, 4294901760
  %688 = vmatpush1.msra.mxu0 %v687
  %689 = vmatprep.subr.mxu0 0.0
  %v690 = vand.u32 %v12, 4294901760
  %691 = vmatpush1.msra.mxu0 %v690
  %692 = vmatprep.subr.mxu0 0.0
  %v693 = vand.u32 %v13, 4294901760
  %694 = vmatpush1.msra.mxu0 %v693
  %695 = vmatprep.subr.mxu0 0.0
  %v696 = vand.u32 %v14, 4294901760
  %697 = vmatpush1.msra.mxu0 %v696
  %698 = vmatprep.subr.mxu0 0.0
  %v699 = vand.u32 %v15, 4294901760
  %700 = vmatpush1.msra.mxu0 %v699
  %701 = vmatprep.subr.mxu0 0.0
  %v702 = vand.u32 %v16, 4294901760
  %703 = vmatpush1.msra.mxu0 %v702
  %704 = vmatprep.subr.mxu0 0.0
  %v705 = vand.u32 %v17, 4294901760
  %706 = vmatpush1.msra.mxu0 %v705
  %707 = vmatprep.subr.mxu0 0.0
  %v708 = vand.u32 %v18, 4294901760
  %709 = vmatpush1.msra.mxu0 %v708
  %710 = vmatprep.subr.mxu0 0.0
  %v711 = vand.u32 %v19, 4294901760
  %712 = vmatpush1.msra.mxu0 %v711
  %713 = vmatprep.subr.mxu0 0.0
  %v714 = vand.u32 %v20, 4294901760
  %715 = vmatpush1.msra.mxu0 %v714
  %716 = vmatprep.subr.mxu0 0.0
  %v717 = vand.u32 %v21, 4294901760
  %718 = vmatpush1.msra.mxu0 %v717
  %719 = vmatprep.subr.mxu0 0.0
  %v720 = vand.u32 %v22, 4294901760
  %721 = vmatpush1.msra.mxu0 %v720
  %722 = vmatprep.subr.mxu0 0.0
  %v723 = vand.u32 %v23, 4294901760
  %724 = vmatpush1.msra.mxu0 %v723
  %725 = vmatprep.subr.mxu0 0.0
  %v726 = vand.u32 %v24, 4294901760
  %727 = vmatpush1.msra.mxu0 %v726
  %728 = vmatprep.subr.mxu0 0.0
  %v729 = vand.u32 %v25, 4294901760
  %730 = vmatpush1.msra.mxu0 %v729
  %731 = vmatprep.subr.mxu0 0.0
  %v732 = vand.u32 %v26, 4294901760
  %733 = vmatpush1.msra.mxu0 %v732
  %734 = vmatprep.subr.mxu0 0.0
  %735 = vmatpush1.msra.mxu0 0.0
  %736 = vmatprep.subr.mxu0 0.0
  %737 = vmatpush1.msra.mxu0 0.0
  %738 = vmatprep.subr.mxu0 0.0
  %739 = vmatpush1.msra.mxu0 0.0
  %740 = vmatprep.subr.mxu0 0.0
  %741 = vmatpush1.msra.mxu0 0.0
  %742 = vmatprep.subr.mxu0 0.0
  %743 = vmatpush1.msra.mxu0 0.0
  %744 = vmatprep.subr.mxu0 0.0
  %745 = vmatpush1.msra.mxu0 0.0
  %746 = vmatprep.subr.mxu0 0.0
  %747 = vmatpush1.msra.mxu0 0.0
  %748 = vmatprep.subr.mxu0 0.0
  %749 = vmatpush1.msra.mxu0 0.0
  %750 = vmatprep.subr.mxu0 0.0
  %751 = vmatpush1.msra.mxu0 0.0
  %752 = vmatprep.subr.mxu0 0.0
  %753 = vmatpush1.msra.mxu0 0.0
  %754 = vmatprep.subr.mxu0 0.0
  %755 = vmatpush1.msra.mxu0 0.0
  %756 = vmatprep.subr.mxu0 0.0
  %757 = vmatpush1.msra.mxu0 0.0
  %758 = vmatprep.subr.mxu0 0.0
  %759 = vmatpush1.msra.mxu0 0.0
  %760 = vmatprep.subr.mxu0 0.0
  %761 = vmatpush1.msra.mxu0 0.0
  %762 = vmatprep.subr.mxu0 0.0
  %763 = vmatpush1.msra.mxu0 0.0
  %764 = vmatprep.subr.mxu0 0.0
  %765 = vmatpush1.msra.mxu0 0.0
  %766 = vmatprep.mubr.f32.mxu0 0.0
  %v767 = vand.u32 %v685, 4294901760
  %v768 = vsub.f32 %v685, %v767
  %v769 = vand.u32 %v768, 4294901760
  %v770 = vsub.f32 %v768, %v769
  %v771 = vand.u32 %v770, 4294901760
  %772 = vmatmul.mubr.f32.gmra.mrb[0].mxu0 %v771
  %v773 = vpop.f32.mrb[0].mxu0
  %v774 = vadd.f32 0.0, %v773
  %v775 = vpop.f32.mrb[0].mxu0
  %776 = vdwg.mxu0
  %777 = vmatprep.subr.mxu0 0.0
  %v778 = vand.u32 %v11, 4294901760
  %v779 = vsub.f32 %v11, %v778
  %v780 = vand.u32 %v779, 4294901760
  %v781 = vsub.f32 %v779, %v780
  %v782 = vand.u32 %v781, 4294901760
  %783 = vmatpush1.msra.mxu0 %v782
  %784 = vmatprep.subr.mxu0 0.0
  %v785 = vand.u32 %v12, 4294901760
  %v786 = vsub.f32 %v12, %v785
  %v787 = vand.u32 %v786, 4294901760
  %v788 = vsub.f32 %v786, %v787
  %v789 = vand.u32 %v788, 4294901760
  %790 = vmatpush1.msra.mxu0 %v789
  %791 = vmatprep.subr.mxu0 0.0
  %v792 = vand.u32 %v13, 4294901760
  %v793 = vsub.f32 %v13, %v792
  %v794 = vand.u32 %v793, 4294901760
  %v795 = vsub.f32 %v793, %v794
  %v796 = vand.u32 %v795, 4294901760
  %797 = vmatpush1.msra.mxu0 %v796
  %798 = vmatprep.subr.mxu0 0.0
  %v799 = vand.u32 %v14, 4294901760
  %v800 = vsub.f32 %v14, %v799
  %v801 = vand.u32 %v800, 4294901760
  %v802 = vsub.f32 %v800, %v801
  %v803 = vand.u32 %v802, 4294901760
  %804 = vmatpush1.msra.mxu0 %v803
  %805 = vmatprep.subr.mxu0 0.0
  %v806 = vand.u32 %v15, 4294901760
  %v807 = vsub.f32 %v15, %v806
  %v808 = vand.u32 %v807, 4294901760
  %v809 = vsub.f32 %v807, %v808
  %v810 = vand.u32 %v809, 4294901760
  %811 = vmatpush1.msra.mxu0 %v810
  %812 = vmatprep.subr.mxu0 0.0
  %v813 = vand.u32 %v16, 4294901760
  %v814 = vsub.f32 %v16, %v813
  %v815 = vand.u32 %v814, 4294901760
  %v816 = vsub.f32 %v814, %v815
  %v817 = vand.u32 %v816, 4294901760
  %818 = vmatpush1.msra.mxu0 %v817
  %819 = vmatprep.subr.mxu0 0.0
  %v820 = vand.u32 %v17, 4294901760
  %v821 = vsub.f32 %v17, %v820
  %v822 = vand.u32 %v821, 4294901760
  %v823 = vsub.f32 %v821, %v822
  %v824 = vand.u32 %v823, 4294901760
  %825 = vmatpush1.msra.mxu0 %v824
  %826 = vmatprep.subr.mxu0 0.0
  %v827 = vand.u32 %v18, 4294901760
  %v828 = vsub.f32 %v18, %v827
  %v829 = vand.u32 %v828, 4294901760
  %v830 = vsub.f32 %v828, %v829
  %v831 = vand.u32 %v830, 4294901760
  %832 = vmatpush1.msra.mxu0 %v831
  %833 = vmatprep.subr.mxu0 0.0
  %v834 = vand.u32 %v19, 4294901760
  %v835 = vsub.f32 %v19, %v834
  %v836 = vand.u32 %v835, 4294901760
  %v837 = vsub.f32 %v835, %v836
  %v838 = vand.u32 %v837, 4294901760
  %839 = vmatpush1.msra.mxu0 %v838
  %840 = vmatprep.subr.mxu0 0.0
  %v841 = vand.u32 %v20, 4294901760
  %v842 = vsub.f32 %v20, %v841
  %v843 = vand.u32 %v842, 4294901760
  %v844 = vsub.f32 %v842, %v843
  %v845 = vand.u32 %v844, 4294901760
  %846 = vmatpush1.msra.mxu0 %v845
  %847 = vmatprep.subr.mxu0 0.0
  %v848 = vand.u32 %v21, 4294901760
  %v849 = vsub.f32 %v21, %v848
  %v850 = vand.u32 %v849, 4294901760
  %v851 = vsub.f32 %v849, %v850
  %v852 = vand.u32 %v851, 4294901760
  %853 = vmatpush1.msra.mxu0 %v852
  %854 = vmatprep.subr.mxu0 0.0
  %v855 = vand.u32 %v22, 4294901760
  %v856 = vsub.f32 %v22, %v855
  %v857 = vand.u32 %v856, 4294901760
  %v858 = vsub.f32 %v856, %v857
  %v859 = vand.u32 %v858, 4294901760
  %860 = vmatpush1.msra.mxu0 %v859
  %861 = vmatprep.subr.mxu0 0.0
  %v862 = vand.u32 %v23, 4294901760
  %v863 = vsub.f32 %v23, %v862
  %v864 = vand.u32 %v863, 4294901760
  %v865 = vsub.f32 %v863, %v864
  %v866 = vand.u32 %v865, 4294901760
  %867 = vmatpush1.msra.mxu0 %v866
  %868 = vmatprep.subr.mxu0 0.0
  %v869 = vand.u32 %v24, 4294901760
  %v870 = vsub.f32 %v24, %v869
  %v871 = vand.u32 %v870, 4294901760
  %v872 = vsub.f32 %v870, %v871
  %v873 = vand.u32 %v872, 4294901760
  %874 = vmatpush1.msra.mxu0 %v873
  %875 = vmatprep.subr.mxu0 0.0
  %v876 = vand.u32 %v25, 4294901760
  %v877 = vsub.f32 %v25, %v876
  %v878 = vand.u32 %v877, 4294901760
  %v879 = vsub.f32 %v877, %v878
  %v880 = vand.u32 %v879, 4294901760
  %881 = vmatpush1.msra.mxu0 %v880
  %882 = vmatprep.subr.mxu0 0.0
  %v883 = vand.u32 %v26, 4294901760
  %v884 = vsub.f32 %v26, %v883
  %v885 = vand.u32 %v884, 4294901760
  %v886 = vsub.f32 %v884, %v885
  %v887 = vand.u32 %v886, 4294901760
  %888 = vmatpush1.msra.mxu0 %v887
  %889 = vmatprep.subr.mxu0 0.0
  %890 = vmatpush1.msra.mxu0 0.0
  %891 = vmatprep.subr.mxu0 0.0
  %892 = vmatpush1.msra.mxu0 0.0
  %893 = vmatprep.subr.mxu0 0.0
  %894 = vmatpush1.msra.mxu0 0.0
  %895 = vmatprep.subr.mxu0 0.0
  %896 = vmatpush1.msra.mxu0 0.0
  %897 = vmatprep.subr.mxu0 0.0
  %898 = vmatpush1.msra.mxu0 0.0
  %899 = vmatprep.subr.mxu0 0.0
  %900 = vmatpush1.msra.mxu0 0.0
  %901 = vmatprep.subr.mxu0 0.0
  %902 = vmatpush1.msra.mxu0 0.0
  %903 = vmatprep.subr.mxu0 0.0
  %904 = vmatpush1.msra.mxu0 0.0
  %905 = vmatprep.subr.mxu0 0.0
  %906 = vmatpush1.msra.mxu0 0.0
  %907 = vmatprep.subr.mxu0 0.0
  %908 = vmatpush1.msra.mxu0 0.0
  %909 = vmatprep.subr.mxu0 0.0
  %910 = vmatpush1.msra.mxu0 0.0
  %911 = vmatprep.subr.mxu0 0.0
  %912 = vmatpush1.msra.mxu0 0.0
  %913 = vmatprep.subr.mxu0 0.0
  %914 = vmatpush1.msra.mxu0 0.0
  %915 = vmatprep.subr.mxu0 0.0
  %916 = vmatpush1.msra.mxu0 0.0
  %917 = vmatprep.subr.mxu0 0.0
  %918 = vmatpush1.msra.mxu0 0.0
  %919 = vmatprep.subr.mxu0 0.0
  %920 = vmatpush1.msra.mxu0 0.0
  %921 = vmatprep.mubr.f32.mxu0 0.0
  %v922 = vand.u32 %v685, 4294901760
  %923 = vmatmul.mubr.f32.gmra.mrb[0].mxu0 %v922
  %v924 = vpop.f32.mrb[0].mxu0
  %v925 = vadd.f32 %v774, %v924
  %v926 = vpop.f32.mrb[0].mxu0
  %927 = vdwg.mxu0
  %928 = vmatprep.subr.mxu0 0.0
  %v929 = vand.u32 %v11, 4294901760
  %v930 = vsub.f32 %v11, %v929
  %931 = vmatpush1.msra.mxu0 %v930
  %932 = vmatprep.subr.mxu0 0.0
  %v933 = vand.u32 %v12, 4294901760
  %v934 = vsub.f32 %v12, %v933
  %935 = vmatpush1.msra.mxu0 %v934
  %936 = vmatprep.subr.mxu0 0.0
  %v937 = vand.u32 %v13, 4294901760
  %v938 = vsub.f32 %v13, %v937
  %939 = vmatpush1.msra.mxu0 %v938
  %940 = vmatprep.subr.mxu0 0.0
  %v941 = vand.u32 %v14, 4294901760
  %v942 = vsub.f32 %v14, %v941
  %943 = vmatpush1.msra.mxu0 %v942
  %944 = vmatprep.subr.mxu0 0.0
  %v945 = vand.u32 %v15, 4294901760
  %v946 = vsub.f32 %v15, %v945
  %947 = vmatpush1.msra.mxu0 %v946
  %948 = vmatprep.subr.mxu0 0.0
  %v949 = vand.u32 %v16, 4294901760
  %v950 = vsub.f32 %v16, %v949
  %951 = vmatpush1.msra.mxu0 %v950
  %952 = vmatprep.subr.mxu0 0.0
  %v953 = vand.u32 %v17, 4294901760
  %v954 = vsub.f32 %v17, %v953
  %955 = vmatpush1.msra.mxu0 %v954
  %956 = vmatprep.subr.mxu0 0.0
  %v957 = vand.u32 %v18, 4294901760
  %v958 = vsub.f32 %v18, %v957
  %959 = vmatpush1.msra.mxu0 %v958
  %960 = vmatprep.subr.mxu0 0.0
  %v961 = vand.u32 %v19, 4294901760
  %v962 = vsub.f32 %v19, %v961
  %963 = vmatpush1.msra.mxu0 %v962
  %964 = vmatprep.subr.mxu0 0.0
  %v965 = vand.u32 %v20, 4294901760
  %v966 = vsub.f32 %v20, %v965
  %967 = vmatpush1.msra.mxu0 %v966
  %968 = vmatprep.subr.mxu0 0.0
  %v969 = vand.u32 %v21, 4294901760
  %v970 = vsub.f32 %v21, %v969
  %971 = vmatpush1.msra.mxu0 %v970
  %972 = vmatprep.subr.mxu0 0.0
  %v973 = vand.u32 %v22, 4294901760
  %v974 = vsub.f32 %v22, %v973
  %975 = vmatpush1.msra.mxu0 %v974
  %976 = vmatprep.subr.mxu0 0.0
  %v977 = vand.u32 %v23, 4294901760
  %v978 = vsub.f32 %v23, %v977
  %979 = vmatpush1.msra.mxu0 %v978
  %980 = vmatprep.subr.mxu0 0.0
  %v981 = vand.u32 %v24, 4294901760
  %v982 = vsub.f32 %v24, %v981
  %983 = vmatpush1.msra.mxu0 %v982
  %984 = vmatprep.subr.mxu0 0.0
  %v985 = vand.u32 %v25, 4294901760
  %v986 = vsub.f32 %v25, %v985
  %987 = vmatpush1.msra.mxu0 %v986
  %988 = vmatprep.subr.mxu0 0.0
  %v989 = vand.u32 %v26, 4294901760
  %v990 = vsub.f32 %v26, %v989
  %991 = vmatpush1.msra.mxu0 %v990
  %992 = vmatprep.subr.mxu0 0.0
  %993 = vmatpush1.msra.mxu0 0.0
  %994 = vmatprep.subr.mxu0 0.0
  %995 = vmatpush1.msra.mxu0 0.0
  %996 = vmatprep.subr.mxu0 0.0
  %997 = vmatpush1.msra.mxu0 0.0
  %998 = vmatprep.subr.mxu0 0.0
  %999 = vmatpush1.msra.mxu0 0.0
  %1000 = vmatprep.subr.mxu0 0.0
  %1001 = vmatpush1.msra.mxu0 0.0
  %1002 = vmatprep.subr.mxu0 0.0
  %1003 = vmatpush1.msra.mxu0 0.0
  %1004 = vmatprep.subr.mxu0 0.0
  %1005 = vmatpush1.msra.mxu0 0.0
  %1006 = vmatprep.subr.mxu0 0.0
  %1007 = vmatpush1.msra.mxu0 0.0
  %1008 = vmatprep.subr.mxu0 0.0
  %1009 = vmatpush1.msra.mxu0 0.0
  %1010 = vmatprep.subr.mxu0 0.0
  %1011 = vmatpush1.msra.mxu0 0.0
  %1012 = vmatprep.subr.mxu0 0.0
  %1013 = vmatpush1.msra.mxu0 0.0
  %1014 = vmatprep.subr.mxu0 0.0
  %1015 = vmatpush1.msra.mxu0 0.0
  %1016 = vmatprep.subr.mxu0 0.0
  %1017 = vmatpush1.msra.mxu0 0.0
  %1018 = vmatprep.subr.mxu0 0.0
  %1019 = vmatpush1.msra.mxu0 0.0
  %1020 = vmatprep.subr.mxu0 0.0
  %1021 = vmatpush1.msra.mxu0 0.0
  %1022 = vmatprep.subr.mxu0 0.0
  %1023 = vmatpush1.msra.mxu0 0.0
  %1024 = vmatprep.mubr.f32.mxu0 0.0
  %v1025 = vand.u32 %v685, 4294901760
  %v1026 = vsub.f32 %v685, %v1025
  %1027 = vmatmul.mubr.f32.gmra.mrb[0].mxu0 %v1026
  %v1028 = vpop.f32.mrb[0].mxu0
  %v1029 = vadd.f32 %v925, %v1028
  %v1030 = vpop.f32.mrb[0].mxu0
  %1031 = vdwg.mxu0
  %1032 = vmatprep.subr.mxu0 0.0
  %v1033 = vand.u32 %v11, 4294901760
  %1034 = vmatpush1.msra.mxu0 %v1033
  %1035 = vmatprep.subr.mxu0 0.0
  %v1036 = vand.u32 %v12, 4294901760
  %1037 = vmatpush1.msra.mxu0 %v1036
  %1038 = vmatprep.subr.mxu0 0.0
  %v1039 = vand.u32 %v13, 4294901760
  %1040 = vmatpush1.msra.mxu0 %v1039
  %1041 = vmatprep.subr.mxu0 0.0
  %v1042 = vand.u32 %v14, 4294901760
  %1043 = vmatpush1.msra.mxu0 %v1042
  %1044 = vmatprep.subr.mxu0 0.0
  %v1045 = vand.u32 %v15, 4294901760
  %1046 = vmatpush1.msra.mxu0 %v1045
  %1047 = vmatprep.subr.mxu0 0.0
  %v1048 = vand.u32 %v16, 4294901760
  %1049 = vmatpush1.msra.mxu0 %v1048
  %1050 = vmatprep.subr.mxu0 0.0
  %v1051 = vand.u32 %v17, 4294901760
  %1052 = vmatpush1.msra.mxu0 %v1051
  %1053 = vmatprep.subr.mxu0 0.0
  %v1054 = vand.u32 %v18, 4294901760
  %1055 = vmatpush1.msra.mxu0 %v1054
  %1056 = vmatprep.subr.mxu0 0.0
  %v1057 = vand.u32 %v19, 4294901760
  %1058 = vmatpush1.msra.mxu0 %v1057
  %1059 = vmatprep.subr.mxu0 0.0
  %v1060 = vand.u32 %v20, 4294901760
  %1061 = vmatpush1.msra.mxu0 %v1060
  %1062 = vmatprep.subr.mxu0 0.0
  %v1063 = vand.u32 %v21, 4294901760
  %1064 = vmatpush1.msra.mxu0 %v1063
  %1065 = vmatprep.subr.mxu0 0.0
  %v1066 = vand.u32 %v22, 4294901760
  %1067 = vmatpush1.msra.mxu0 %v1066
  %1068 = vmatprep.subr.mxu0 0.0
  %v1069 = vand.u32 %v23, 4294901760
  %1070 = vmatpush1.msra.mxu0 %v1069
  %1071 = vmatprep.subr.mxu0 0.0
  %v1072 = vand.u32 %v24, 4294901760
  %1073 = vmatpush1.msra.mxu0 %v1072
  %1074 = vmatprep.subr.mxu0 0.0
  %v1075 = vand.u32 %v25, 4294901760
  %1076 = vmatpush1.msra.mxu0 %v1075
  %1077 = vmatprep.subr.mxu0 0.0
  %v1078 = vand.u32 %v26, 4294901760
  %1079 = vmatpush1.msra.mxu0 %v1078
  %1080 = vmatprep.subr.mxu0 0.0
  %1081 = vmatpush1.msra.mxu0 0.0
  %1082 = vmatprep.subr.mxu0 0.0
  %1083 = vmatpush1.msra.mxu0 0.0
  %1084 = vmatprep.subr.mxu0 0.0
  %1085 = vmatpush1.msra.mxu0 0.0
  %1086 = vmatprep.subr.mxu0 0.0
  %1087 = vmatpush1.msra.mxu0 0.0
  %1088 = vmatprep.subr.mxu0 0.0
  %1089 = vmatpush1.msra.mxu0 0.0
  %1090 = vmatprep.subr.mxu0 0.0
  %1091 = vmatpush1.msra.mxu0 0.0
  %1092 = vmatprep.subr.mxu0 0.0
  %1093 = vmatpush1.msra.mxu0 0.0
  %1094 = vmatprep.subr.mxu0 0.0
  %1095 = vmatpush1.msra.mxu0 0.0
  %1096 = vmatprep.subr.mxu0 0.0
  %1097 = vmatpush1.msra.mxu0 0.0
  %1098 = vmatprep.subr.mxu0 0.0
  %1099 = vmatpush1.msra.mxu0 0.0
  %1100 = vmatprep.subr.mxu0 0.0
  %1101 = vmatpush1.msra.mxu0 0.0
  %1102 = vmatprep.subr.mxu0 0.0
  %1103 = vmatpush1.msra.mxu0 0.0
  %1104 = vmatprep.subr.mxu0 0.0
  %1105 = vmatpush1.msra.mxu0 0.0
  %1106 = vmatprep.subr.mxu0 0.0
  %1107 = vmatpush1.msra.mxu0 0.0
  %1108 = vmatprep.subr.mxu0 0.0
  %1109 = vmatpush1.msra.mxu0 0.0
  %1110 = vmatprep.subr.mxu0 0.0
  %1111 = vmatpush1.msra.mxu0 0.0
  %1112 = vmatprep.mubr.f32.mxu0 0.0
  %v1113 = vand.u32 %v685, 4294901760
  %v1114 = vsub.f32 %v685, %v1113
  %v1115 = vand.u32 %v1114, 4294901760
  %1116 = vmatmul.mubr.f32.gmra.mrb[0].mxu0 %v1115
  %v1117 = vpop.f32.mrb[0].mxu0
  %v1118 = vadd.f32 %v1029, %v1117
  %v1119 = vpop.f32.mrb[0].mxu0
  %1120 = vdwg.mxu0
  %1121 = vmatprep.subr.mxu0 0.0
  %v1122 = vand.u32 %v11, 4294901760
  %v1123 = vsub.f32 %v11, %v1122
  %v1124 = vand.u32 %v1123, 4294901760
  %1125 = vmatpush1.msra.mxu0 %v1124
  %1126 = vmatprep.subr.mxu0 0.0
  %v1127 = vand.u32 %v12, 4294901760
  %v1128 = vsub.f32 %v12, %v1127
  %v1129 = vand.u32 %v1128, 4294901760
  %1130 = vmatpush1.msra.mxu0 %v1129
  %1131 = vmatprep.subr.mxu0 0.0
  %v1132 = vand.u32 %v13, 4294901760
  %v1133 = vsub.f32 %v13, %v1132
  %v1134 = vand.u32 %v1133, 4294901760
  %1135 = vmatpush1.msra.mxu0 %v1134
  %1136 = vmatprep.subr.mxu0 0.0
  %v1137 = vand.u32 %v14, 4294901760
  %v1138 = vsub.f32 %v14, %v1137
  %v1139 = vand.u32 %v1138, 4294901760
  %1140 = vmatpush1.msra.mxu0 %v1139
  %1141 = vmatprep.subr.mxu0 0.0
  %v1142 = vand.u32 %v15, 4294901760
  %v1143 = vsub.f32 %v15, %v1142
  %v1144 = vand.u32 %v1143, 4294901760
  %1145 = vmatpush1.msra.mxu0 %v1144
  %1146 = vmatprep.subr.mxu0 0.0
  %v1147 = vand.u32 %v16, 4294901760
  %v1148 = vsub.f32 %v16, %v1147
  %v1149 = vand.u32 %v1148, 4294901760
  %1150 = vmatpush1.msra.mxu0 %v1149
  %1151 = vmatprep.subr.mxu0 0.0
  %v1152 = vand.u32 %v17, 4294901760
  %v1153 = vsub.f32 %v17, %v1152
  %v1154 = vand.u32 %v1153, 4294901760
  %1155 = vmatpush1.msra.mxu0 %v1154
  %1156 = vmatprep.subr.mxu0 0.0
  %v1157 = vand.u32 %v18, 4294901760
  %v1158 = vsub.f32 %v18, %v1157
  %v1159 = vand.u32 %v1158, 4294901760
  %1160 = vmatpush1.msra.mxu0 %v1159
  %1161 = vmatprep.subr.mxu0 0.0
  %v1162 = vand.u32 %v19, 4294901760
  %v1163 = vsub.f32 %v19, %v1162
  %v1164 = vand.u32 %v1163, 4294901760
  %1165 = vmatpush1.msra.mxu0 %v1164
  %1166 = vmatprep.subr.mxu0 0.0
  %v1167 = vand.u32 %v20, 4294901760
  %v1168 = vsub.f32 %v20, %v1167
  %v1169 = vand.u32 %v1168, 4294901760
  %1170 = vmatpush1.msra.mxu0 %v1169
  %1171 = vmatprep.subr.mxu0 0.0
  %v1172 = vand.u32 %v21, 4294901760
  %v1173 = vsub.f32 %v21, %v1172
  %v1174 = vand.u32 %v1173, 4294901760
  %1175 = vmatpush1.msra.mxu0 %v1174
  %1176 = vmatprep.subr.mxu0 0.0
  %v1177 = vand.u32 %v22, 4294901760
  %v1178 = vsub.f32 %v22, %v1177
  %v1179 = vand.u32 %v1178, 4294901760
  %1180 = vmatpush1.msra.mxu0 %v1179
  %1181 = vmatprep.subr.mxu0 0.0
  %v1182 = vand.u32 %v23, 4294901760
  %v1183 = vsub.f32 %v23, %v1182
  %v1184 = vand.u32 %v1183, 4294901760
  %1185 = vmatpush1.msra.mxu0 %v1184
  %1186 = vmatprep.subr.mxu0 0.0
  %v1187 = vand.u32 %v24, 4294901760
  %v1188 = vsub.f32 %v24, %v1187
  %v1189 = vand.u32 %v1188, 4294901760
  %1190 = vmatpush1.msra.mxu0 %v1189
  %1191 = vmatprep.subr.mxu0 0.0
  %v1192 = vand.u32 %v25, 4294901760
  %v1193 = vsub.f32 %v25, %v1192
  %v1194 = vand.u32 %v1193, 4294901760
  %1195 = vmatpush1.msra.mxu0 %v1194
  %1196 = vmatprep.subr.mxu0 0.0
  %v1197 = vand.u32 %v26, 4294901760
  %v1198 = vsub.f32 %v26, %v1197
  %v1199 = vand.u32 %v1198, 4294901760
  %1200 = vmatpush1.msra.mxu0 %v1199
  %1201 = vmatprep.subr.mxu0 0.0
  %1202 = vmatpush1.msra.mxu0 0.0
  %1203 = vmatprep.subr.mxu0 0.0
  %1204 = vmatpush1.msra.mxu0 0.0
  %1205 = vmatprep.subr.mxu0 0.0
  %1206 = vmatpush1.msra.mxu0 0.0
  %1207 = vmatprep.subr.mxu0 0.0
  %1208 = vmatpush1.msra.mxu0 0.0
  %1209 = vmatprep.subr.mxu0 0.0
  %1210 = vmatpush1.msra.mxu0 0.0
  %1211 = vmatprep.subr.mxu0 0.0
  %1212 = vmatpush1.msra.mxu0 0.0
  %1213 = vmatprep.subr.mxu0 0.0
  %1214 = vmatpush1.msra.mxu0 0.0
  %1215 = vmatprep.subr.mxu0 0.0
  %1216 = vmatpush1.msra.mxu0 0.0
  %1217 = vmatprep.subr.mxu0 0.0
  %1218 = vmatpush1.msra.mxu0 0.0
  %1219 = vmatprep.subr.mxu0 0.0
  %1220 = vmatpush1.msra.mxu0 0.0
  %1221 = vmatprep.subr.mxu0 0.0
  %1222 = vmatpush1.msra.mxu0 0.0
  %1223 = vmatprep.subr.mxu0 0.0
  %1224 = vmatpush1.msra.mxu0 0.0
  %1225 = vmatprep.subr.mxu0 0.0
  %1226 = vmatpush1.msra.mxu0 0.0
  %1227 = vmatprep.subr.mxu0 0.0
  %1228 = vmatpush1.msra.mxu0 0.0
  %1229 = vmatprep.subr.mxu0 0.0
  %1230 = vmatpush1.msra.mxu0 0.0
  %1231 = vmatprep.subr.mxu0 0.0
  %1232 = vmatpush1.msra.mxu0 0.0
  %1233 = vmatprep.mubr.f32.mxu0 0.0
  %v1234 = vand.u32 %v685, 4294901760
  %1235 = vmatmul.mubr.f32.gmra.mrb[0].mxu0 %v1234
  %v1236 = vpop.f32.mrb[0].mxu0
  %v1237 = vadd.f32 %v1118, %v1236
  %v1238 = vpop.f32.mrb[0].mxu0
  %1239 = vdwg.mxu0
  %1240 = vmatprep.subr.mxu0 0.0
  %v1241 = vand.u32 %v11, 4294901760
  %1242 = vmatpush1.msra.mxu0 %v1241
  %1243 = vmatprep.subr.mxu0 0.0
  %v1244 = vand.u32 %v12, 4294901760
  %1245 = vmatpush1.msra.mxu0 %v1244
  %1246 = vmatprep.subr.mxu0 0.0
  %v1247 = vand.u32 %v13, 4294901760
  %1248 = vmatpush1.msra.mxu0 %v1247
  %1249 = vmatprep.subr.mxu0 0.0
  %v1250 = vand.u32 %v14, 4294901760
  %1251 = vmatpush1.msra.mxu0 %v1250
  %1252 = vmatprep.subr.mxu0 0.0
  %v1253 = vand.u32 %v15, 4294901760
  %1254 = vmatpush1.msra.mxu0 %v1253
  %1255 = vmatprep.subr.mxu0 0.0
  %v1256 = vand.u32 %v16, 4294901760
  %1257 = vmatpush1.msra.mxu0 %v1256
  %1258 = vmatprep.subr.mxu0 0.0
  %v1259 = vand.u32 %v17, 4294901760
  %1260 = vmatpush1.msra.mxu0 %v1259
  %1261 = vmatprep.subr.mxu0 0.0
  %v1262 = vand.u32 %v18, 4294901760
  %1263 = vmatpush1.msra.mxu0 %v1262
  %1264 = vmatprep.subr.mxu0 0.0
  %v1265 = vand.u32 %v19, 4294901760
  %1266 = vmatpush1.msra.mxu0 %v1265
  %1267 = vmatprep.subr.mxu0 0.0
  %v1268 = vand.u32 %v20, 4294901760
  %1269 = vmatpush1.msra.mxu0 %v1268
  %1270 = vmatprep.subr.mxu0 0.0
  %v1271 = vand.u32 %v21, 4294901760
  %1272 = vmatpush1.msra.mxu0 %v1271
  %1273 = vmatprep.subr.mxu0 0.0
  %v1274 = vand.u32 %v22, 4294901760
  %1275 = vmatpush1.msra.mxu0 %v1274
  %1276 = vmatprep.subr.mxu0 0.0
  %v1277 = vand.u32 %v23, 4294901760
  %1278 = vmatpush1.msra.mxu0 %v1277
  %1279 = vmatprep.subr.mxu0 0.0
  %v1280 = vand.u32 %v24, 4294901760
  %1281 = vmatpush1.msra.mxu0 %v1280
  %1282 = vmatprep.subr.mxu0 0.0
  %v1283 = vand.u32 %v25, 4294901760
  %1284 = vmatpush1.msra.mxu0 %v1283
  %1285 = vmatprep.subr.mxu0 0.0
  %v1286 = vand.u32 %v26, 4294901760
  %1287 = vmatpush1.msra.mxu0 %v1286
  %1288 = vmatprep.subr.mxu0 0.0
  %1289 = vmatpush1.msra.mxu0 0.0
  %1290 = vmatprep.subr.mxu0 0.0
  %1291 = vmatpush1.msra.mxu0 0.0
  %1292 = vmatprep.subr.mxu0 0.0
  %1293 = vmatpush1.msra.mxu0 0.0
  %1294 = vmatprep.subr.mxu0 0.0
  %1295 = vmatpush1.msra.mxu0 0.0
  %1296 = vmatprep.subr.mxu0 0.0
  %1297 = vmatpush1.msra.mxu0 0.0
  %1298 = vmatprep.subr.mxu0 0.0
  %1299 = vmatpush1.msra.mxu0 0.0
  %1300 = vmatprep.subr.mxu0 0.0
  %1301 = vmatpush1.msra.mxu0 0.0
  %1302 = vmatprep.subr.mxu0 0.0
  %1303 = vmatpush1.msra.mxu0 0.0
  %1304 = vmatprep.subr.mxu0 0.0
  %1305 = vmatpush1.msra.mxu0 0.0
  %1306 = vmatprep.subr.mxu0 0.0
  %1307 = vmatpush1.msra.mxu0 0.0
  %1308 = vmatprep.subr.mxu0 0.0
  %1309 = vmatpush1.msra.mxu0 0.0
  %1310 = vmatprep.subr.mxu0 0.0
  %1311 = vmatpush1.msra.mxu0 0.0
  %1312 = vmatprep.subr.mxu0 0.0
  %1313 = vmatpush1.msra.mxu0 0.0
  %1314 = vmatprep.subr.mxu0 0.0
  %1315 = vmatpush1.msra.mxu0 0.0
  %1316 = vmatprep.subr.mxu0 0.0
  %1317 = vmatpush1.msra.mxu0 0.0
  %1318 = vmatprep.subr.mxu0 0.0
  %1319 = vmatpush1.msra.mxu0 0.0
  %1320 = vmatprep.mubr.f32.mxu0 0.0
  %v1321 = vand.u32 %v685, 4294901760
  %1322 = vmatmul.mubr.f32.gmra.mrb[0].mxu0 %v1321
  %v1323 = vpop.f32.mrb[0].mxu0
  %v1324 = vadd.f32 %v1237, %v1323
  %v1325 = vpop.f32.mrb[0].mxu0
  %1326 = vdwg.mxu0
  %1328 = vrot.lane.b32.xlu0 %v1324, 32
  %v1329 = vpop.permute.xlu0 %1328
  %vm1331 = vcmask 523520
  %1332 = vst.msk [vmem:[%s2] sm:$0xff] %vm1331, %v1329
  %v1333 = vld [vmem:[%s0] sm:$0xff]
  %1334 = vset.pattern.permute.xlu0 2
  %1335 = vperm.xlu0 %1334, %v1333
  %v1336 = vpop.permute.xlu0 %1335
  %vm1337 = vcmp.eq.s32.totalorder %v1336, %v28
  %v1338 = vsel %vm1337, 1, 0
  %v1339 = vcvt.s32.f32 %v1338
  %1340 = vmatprep.subr.mxu0 0.0
  %v1341 = vand.u32 %v11, 4294901760
  %1342 = vmatpush1.msra.mxu0 %v1341
  %1343 = vmatprep.subr.mxu0 0.0
  %v1344 = vand.u32 %v12, 4294901760
  %1345 = vmatpush1.msra.mxu0 %v1344
  %1346 = vmatprep.subr.mxu0 0.0
  %v1347 = vand.u32 %v13, 4294901760
  %1348 = vmatpush1.msra.mxu0 %v1347
  %1349 = vmatprep.subr.mxu0 0.0
  %v1350 = vand.u32 %v14, 4294901760
  %1351 = vmatpush1.msra.mxu0 %v1350
  %1352 = vmatprep.subr.mxu0 0.0
  %v1353 = vand.u32 %v15, 4294901760
  %1354 = vmatpush1.msra.mxu0 %v1353
  %1355 = vmatprep.subr.mxu0 0.0
  %v1356 = vand.u32 %v16, 4294901760
  %1357 = vmatpush1.msra.mxu0 %v1356
  %1358 = vmatprep.subr.mxu0 0.0
  %v1359 = vand.u32 %v17, 4294901760
  %1360 = vmatpush1.msra.mxu0 %v1359
  %1361 = vmatprep.subr.mxu0 0.0
  %v1362 = vand.u32 %v18, 4294901760
  %1363 = vmatpush1.msra.mxu0 %v1362
  %1364 = vmatprep.subr.mxu0 0.0
  %v1365 = vand.u32 %v19, 4294901760
  %1366 = vmatpush1.msra.mxu0 %v1365
  %1367 = vmatprep.subr.mxu0 0.0
  %v1368 = vand.u32 %v20, 4294901760
  %1369 = vmatpush1.msra.mxu0 %v1368
  %1370 = vmatprep.subr.mxu0 0.0
  %v1371 = vand.u32 %v21, 4294901760
  %1372 = vmatpush1.msra.mxu0 %v1371
  %1373 = vmatprep.subr.mxu0 0.0
  %v1374 = vand.u32 %v22, 4294901760
  %1375 = vmatpush1.msra.mxu0 %v1374
  %1376 = vmatprep.subr.mxu0 0.0
  %v1377 = vand.u32 %v23, 4294901760
  %1378 = vmatpush1.msra.mxu0 %v1377
  %1379 = vmatprep.subr.mxu0 0.0
  %v1380 = vand.u32 %v24, 4294901760
  %1381 = vmatpush1.msra.mxu0 %v1380
  %1382 = vmatprep.subr.mxu0 0.0
  %v1383 = vand.u32 %v25, 4294901760
  %1384 = vmatpush1.msra.mxu0 %v1383
  %1385 = vmatprep.subr.mxu0 0.0
  %v1386 = vand.u32 %v26, 4294901760
  %1387 = vmatpush1.msra.mxu0 %v1386
  %1388 = vmatprep.subr.mxu0 0.0
  %1389 = vmatpush1.msra.mxu0 0.0
  %1390 = vmatprep.subr.mxu0 0.0
  %1391 = vmatpush1.msra.mxu0 0.0
  %1392 = vmatprep.subr.mxu0 0.0
  %1393 = vmatpush1.msra.mxu0 0.0
  %1394 = vmatprep.subr.mxu0 0.0
  %1395 = vmatpush1.msra.mxu0 0.0
  %1396 = vmatprep.subr.mxu0 0.0
  %1397 = vmatpush1.msra.mxu0 0.0
  %1398 = vmatprep.subr.mxu0 0.0
  %1399 = vmatpush1.msra.mxu0 0.0
  %1400 = vmatprep.subr.mxu0 0.0
  %1401 = vmatpush1.msra.mxu0 0.0
  %1402 = vmatprep.subr.mxu0 0.0
  %1403 = vmatpush1.msra.mxu0 0.0
  %1404 = vmatprep.subr.mxu0 0.0
  %1405 = vmatpush1.msra.mxu0 0.0
  %1406 = vmatprep.subr.mxu0 0.0
  %1407 = vmatpush1.msra.mxu0 0.0
  %1408 = vmatprep.subr.mxu0 0.0
  %1409 = vmatpush1.msra.mxu0 0.0
  %1410 = vmatprep.subr.mxu0 0.0
  %1411 = vmatpush1.msra.mxu0 0.0
  %1412 = vmatprep.subr.mxu0 0.0
  %1413 = vmatpush1.msra.mxu0 0.0
  %1414 = vmatprep.subr.mxu0 0.0
  %1415 = vmatpush1.msra.mxu0 0.0
  %1416 = vmatprep.subr.mxu0 0.0
  %1417 = vmatpush1.msra.mxu0 0.0
  %1418 = vmatprep.subr.mxu0 0.0
  %1419 = vmatpush1.msra.mxu0 0.0
  %1420 = vmatprep.mubr.f32.mxu0 0.0
  %v1421 = vand.u32 %v1339, 4294901760
  %v1422 = vsub.f32 %v1339, %v1421
  %v1423 = vand.u32 %v1422, 4294901760
  %v1424 = vsub.f32 %v1422, %v1423
  %v1425 = vand.u32 %v1424, 4294901760
  %1426 = vmatmul.mubr.f32.gmra.mrb[0].mxu0 %v1425
  %v1427 = vpop.f32.mrb[0].mxu0
  %v1428 = vadd.f32 0.0, %v1427
  %v1429 = vpop.f32.mrb[0].mxu0
  %1430 = vdwg.mxu0
  %1431 = vmatprep.subr.mxu0 0.0
  %v1432 = vand.u32 %v11, 4294901760
  %v1433 = vsub.f32 %v11, %v1432
  %v1434 = vand.u32 %v1433, 4294901760
  %v1435 = vsub.f32 %v1433, %v1434
  %v1436 = vand.u32 %v1435, 4294901760
  %1437 = vmatpush1.msra.mxu0 %v1436
  %1438 = vmatprep.subr.mxu0 0.0
  %v1439 = vand.u32 %v12, 4294901760
  %v1440 = vsub.f32 %v12, %v1439
  %v1441 = vand.u32 %v1440, 4294901760
  %v1442 = vsub.f32 %v1440, %v1441
  %v1443 = vand.u32 %v1442, 4294901760
  %1444 = vmatpush1.msra.mxu0 %v1443
  %1445 = vmatprep.subr.mxu0 0.0
  %v1446 = vand.u32 %v13, 4294901760
  %v1447 = vsub.f32 %v13, %v1446
  %v1448 = vand.u32 %v1447, 4294901760
  %v1449 = vsub.f32 %v1447, %v1448
  %v1450 = vand.u32 %v1449, 4294901760
  %1451 = vmatpush1.msra.mxu0 %v1450
  %1452 = vmatprep.subr.mxu0 0.0
  %v1453 = vand.u32 %v14, 4294901760
  %v1454 = vsub.f32 %v14, %v1453
  %v1455 = vand.u32 %v1454, 4294901760
  %v1456 = vsub.f32 %v1454, %v1455
  %v1457 = vand.u32 %v1456, 4294901760
  %1458 = vmatpush1.msra.mxu0 %v1457
  %1459 = vmatprep.subr.mxu0 0.0
  %v1460 = vand.u32 %v15, 4294901760
  %v1461 = vsub.f32 %v15, %v1460
  %v1462 = vand.u32 %v1461, 4294901760
  %v1463 = vsub.f32 %v1461, %v1462
  %v1464 = vand.u32 %v1463, 4294901760
  %1465 = vmatpush1.msra.mxu0 %v1464
  %1466 = vmatprep.subr.mxu0 0.0
  %v1467 = vand.u32 %v16, 4294901760
  %v1468 = vsub.f32 %v16, %v1467
  %v1469 = vand.u32 %v1468, 4294901760
  %v1470 = vsub.f32 %v1468, %v1469
  %v1471 = vand.u32 %v1470, 4294901760
  %1472 = vmatpush1.msra.mxu0 %v1471
  %1473 = vmatprep.subr.mxu0 0.0
  %v1474 = vand.u32 %v17, 4294901760
  %v1475 = vsub.f32 %v17, %v1474
  %v1476 = vand.u32 %v1475, 4294901760
  %v1477 = vsub.f32 %v1475, %v1476
  %v1478 = vand.u32 %v1477, 4294901760
  %1479 = vmatpush1.msra.mxu0 %v1478
  %1480 = vmatprep.subr.mxu0 0.0
  %v1481 = vand.u32 %v18, 4294901760
  %v1482 = vsub.f32 %v18, %v1481
  %v1483 = vand.u32 %v1482, 4294901760
  %v1484 = vsub.f32 %v1482, %v1483
  %v1485 = vand.u32 %v1484, 4294901760
  %1486 = vmatpush1.msra.mxu0 %v1485
  %1487 = vmatprep.subr.mxu0 0.0
  %v1488 = vand.u32 %v19, 4294901760
  %v1489 = vsub.f32 %v19, %v1488
  %v1490 = vand.u32 %v1489, 4294901760
  %v1491 = vsub.f32 %v1489, %v1490
  %v1492 = vand.u32 %v1491, 4294901760
  %1493 = vmatpush1.msra.mxu0 %v1492
  %1494 = vmatprep.subr.mxu0 0.0
  %v1495 = vand.u32 %v20, 4294901760
  %v1496 = vsub.f32 %v20, %v1495
  %v1497 = vand.u32 %v1496, 4294901760
  %v1498 = vsub.f32 %v1496, %v1497
  %v1499 = vand.u32 %v1498, 4294901760
  %1500 = vmatpush1.msra.mxu0 %v1499
  %1501 = vmatprep.subr.mxu0 0.0
  %v1502 = vand.u32 %v21, 4294901760
  %v1503 = vsub.f32 %v21, %v1502
  %v1504 = vand.u32 %v1503, 4294901760
  %v1505 = vsub.f32 %v1503, %v1504
  %v1506 = vand.u32 %v1505, 4294901760
  %1507 = vmatpush1.msra.mxu0 %v1506
  %1508 = vmatprep.subr.mxu0 0.0
  %v1509 = vand.u32 %v22, 4294901760
  %v1510 = vsub.f32 %v22, %v1509
  %v1511 = vand.u32 %v1510, 4294901760
  %v1512 = vsub.f32 %v1510, %v1511
  %v1513 = vand.u32 %v1512, 4294901760
  %1514 = vmatpush1.msra.mxu0 %v1513
  %1515 = vmatprep.subr.mxu0 0.0
  %v1516 = vand.u32 %v23, 4294901760
  %v1517 = vsub.f32 %v23, %v1516
  %v1518 = vand.u32 %v1517, 4294901760
  %v1519 = vsub.f32 %v1517, %v1518
  %v1520 = vand.u32 %v1519, 4294901760
  %1521 = vmatpush1.msra.mxu0 %v1520
  %1522 = vmatprep.subr.mxu0 0.0
  %v1523 = vand.u32 %v24, 4294901760
  %v1524 = vsub.f32 %v24, %v1523
  %v1525 = vand.u32 %v1524, 4294901760
  %v1526 = vsub.f32 %v1524, %v1525
  %v1527 = vand.u32 %v1526, 4294901760
  %1528 = vmatpush1.msra.mxu0 %v1527
  %1529 = vmatprep.subr.mxu0 0.0
  %v1530 = vand.u32 %v25, 4294901760
  %v1531 = vsub.f32 %v25, %v1530
  %v1532 = vand.u32 %v1531, 4294901760
  %v1533 = vsub.f32 %v1531, %v1532
  %v1534 = vand.u32 %v1533, 4294901760
  %1535 = vmatpush1.msra.mxu0 %v1534
  %1536 = vmatprep.subr.mxu0 0.0
  %v1537 = vand.u32 %v26, 4294901760
  %v1538 = vsub.f32 %v26, %v1537
  %v1539 = vand.u32 %v1538, 4294901760
  %v1540 = vsub.f32 %v1538, %v1539
  %v1541 = vand.u32 %v1540, 4294901760
  %1542 = vmatpush1.msra.mxu0 %v1541
  %1543 = vmatprep.subr.mxu0 0.0
  %1544 = vmatpush1.msra.mxu0 0.0
  %1545 = vmatprep.subr.mxu0 0.0
  %1546 = vmatpush1.msra.mxu0 0.0
  %1547 = vmatprep.subr.mxu0 0.0
  %1548 = vmatpush1.msra.mxu0 0.0
  %1549 = vmatprep.subr.mxu0 0.0
  %1550 = vmatpush1.msra.mxu0 0.0
  %1551 = vmatprep.subr.mxu0 0.0
  %1552 = vmatpush1.msra.mxu0 0.0
  %1553 = vmatprep.subr.mxu0 0.0
  %1554 = vmatpush1.msra.mxu0 0.0
  %1555 = vmatprep.subr.mxu0 0.0
  %1556 = vmatpush1.msra.mxu0 0.0
  %1557 = vmatprep.subr.mxu0 0.0
  %1558 = vmatpush1.msra.mxu0 0.0
  %1559 = vmatprep.subr.mxu0 0.0
  %1560 = vmatpush1.msra.mxu0 0.0
  %1561 = vmatprep.subr.mxu0 0.0
  %1562 = vmatpush1.msra.mxu0 0.0
  %1563 = vmatprep.subr.mxu0 0.0
  %1564 = vmatpush1.msra.mxu0 0.0
  %1565 = vmatprep.subr.mxu0 0.0
  %1566 = vmatpush1.msra.mxu0 0.0
  %1567 = vmatprep.subr.mxu0 0.0
  %1568 = vmatpush1.msra.mxu0 0.0
  %1569 = vmatprep.subr.mxu0 0.0
  %1570 = vmatpush1.msra.mxu0 0.0
  %1571 = vmatprep.subr.mxu0 0.0
  %1572 = vmatpush1.msra.mxu0 0.0
  %1573 = vmatprep.subr.mxu0 0.0
  %1574 = vmatpush1.msra.mxu0 0.0
  %1575 = vmatprep.mubr.f32.mxu0 0.0
  %v1576 = vand.u32 %v1339, 4294901760
  %1577 = vmatmul.mubr.f32.gmra.mrb[0].mxu0 %v1576
  %v1578 = vpop.f32.mrb[0].mxu0
  %v1579 = vadd.f32 %v1428, %v1578
  %v1580 = vpop.f32.mrb[0].mxu0
  %1581 = vdwg.mxu0
  %1582 = vmatprep.subr.mxu0 0.0
  %v1583 = vand.u32 %v11, 4294901760
  %v1584 = vsub.f32 %v11, %v1583
  %1585 = vmatpush1.msra.mxu0 %v1584
  %1586 = vmatprep.subr.mxu0 0.0
  %v1587 = vand.u32 %v12, 4294901760
  %v1588 = vsub.f32 %v12, %v1587
  %1589 = vmatpush1.msra.mxu0 %v1588
  %1590 = vmatprep.subr.mxu0 0.0
  %v1591 = vand.u32 %v13, 4294901760
  %v1592 = vsub.f32 %v13, %v1591
  %1593 = vmatpush1.msra.mxu0 %v1592
  %1594 = vmatprep.subr.mxu0 0.0
  %v1595 = vand.u32 %v14, 4294901760
  %v1596 = vsub.f32 %v14, %v1595
  %1597 = vmatpush1.msra.mxu0 %v1596
  %1598 = vmatprep.subr.mxu0 0.0
  %v1599 = vand.u32 %v15, 4294901760
  %v1600 = vsub.f32 %v15, %v1599
  %1601 = vmatpush1.msra.mxu0 %v1600
  %1602 = vmatprep.subr.mxu0 0.0
  %v1603 = vand.u32 %v16, 4294901760
  %v1604 = vsub.f32 %v16, %v1603
  %1605 = vmatpush1.msra.mxu0 %v1604
  %1606 = vmatprep.subr.mxu0 0.0
  %v1607 = vand.u32 %v17, 4294901760
  %v1608 = vsub.f32 %v17, %v1607
  %1609 = vmatpush1.msra.mxu0 %v1608
  %1610 = vmatprep.subr.mxu0 0.0
  %v1611 = vand.u32 %v18, 4294901760
  %v1612 = vsub.f32 %v18, %v1611
  %1613 = vmatpush1.msra.mxu0 %v1612
  %1614 = vmatprep.subr.mxu0 0.0
  %v1615 = vand.u32 %v19, 4294901760
  %v1616 = vsub.f32 %v19, %v1615
  %1617 = vmatpush1.msra.mxu0 %v1616
  %1618 = vmatprep.subr.mxu0 0.0
  %v1619 = vand.u32 %v20, 4294901760
  %v1620 = vsub.f32 %v20, %v1619
  %1621 = vmatpush1.msra.mxu0 %v1620
  %1622 = vmatprep.subr.mxu0 0.0
  %v1623 = vand.u32 %v21, 4294901760
  %v1624 = vsub.f32 %v21, %v1623
  %1625 = vmatpush1.msra.mxu0 %v1624
  %1626 = vmatprep.subr.mxu0 0.0
  %v1627 = vand.u32 %v22, 4294901760
  %v1628 = vsub.f32 %v22, %v1627
  %1629 = vmatpush1.msra.mxu0 %v1628
  %1630 = vmatprep.subr.mxu0 0.0
  %v1631 = vand.u32 %v23, 4294901760
  %v1632 = vsub.f32 %v23, %v1631
  %1633 = vmatpush1.msra.mxu0 %v1632
  %1634 = vmatprep.subr.mxu0 0.0
  %v1635 = vand.u32 %v24, 4294901760
  %v1636 = vsub.f32 %v24, %v1635
  %1637 = vmatpush1.msra.mxu0 %v1636
  %1638 = vmatprep.subr.mxu0 0.0
  %v1639 = vand.u32 %v25, 4294901760
  %v1640 = vsub.f32 %v25, %v1639
  %1641 = vmatpush1.msra.mxu0 %v1640
  %1642 = vmatprep.subr.mxu0 0.0
  %v1643 = vand.u32 %v26, 4294901760
  %v1644 = vsub.f32 %v26, %v1643
  %1645 = vmatpush1.msra.mxu0 %v1644
  %1646 = vmatprep.subr.mxu0 0.0
  %1647 = vmatpush1.msra.mxu0 0.0
  %1648 = vmatprep.subr.mxu0 0.0
  %1649 = vmatpush1.msra.mxu0 0.0
  %1650 = vmatprep.subr.mxu0 0.0
  %1651 = vmatpush1.msra.mxu0 0.0
  %1652 = vmatprep.subr.mxu0 0.0
  %1653 = vmatpush1.msra.mxu0 0.0
  %1654 = vmatprep.subr.mxu0 0.0
  %1655 = vmatpush1.msra.mxu0 0.0
  %1656 = vmatprep.subr.mxu0 0.0
  %1657 = vmatpush1.msra.mxu0 0.0
  %1658 = vmatprep.subr.mxu0 0.0
  %1659 = vmatpush1.msra.mxu0 0.0
  %1660 = vmatprep.subr.mxu0 0.0
  %1661 = vmatpush1.msra.mxu0 0.0
  %1662 = vmatprep.subr.mxu0 0.0
  %1663 = vmatpush1.msra.mxu0 0.0
  %1664 = vmatprep.subr.mxu0 0.0
  %1665 = vmatpush1.msra.mxu0 0.0
  %1666 = vmatprep.subr.mxu0 0.0
  %1667 = vmatpush1.msra.mxu0 0.0
  %1668 = vmatprep.subr.mxu0 0.0
  %1669 = vmatpush1.msra.mxu0 0.0
  %1670 = vmatprep.subr.mxu0 0.0
  %1671 = vmatpush1.msra.mxu0 0.0
  %1672 = vmatprep.subr.mxu0 0.0
  %1673 = vmatpush1.msra.mxu0 0.0
  %1674 = vmatprep.subr.mxu0 0.0
  %1675 = vmatpush1.msra.mxu0 0.0
  %1676 = vmatprep.subr.mxu0 0.0
  %1677 = vmatpush1.msra.mxu0 0.0
  %1678 = vmatprep.mubr.f32.mxu0 0.0
  %v1679 = vand.u32 %v1339, 4294901760
  %v1680 = vsub.f32 %v1339, %v1679
  %1681 = vmatmul.mubr.f32.gmra.mrb[0].mxu0 %v1680
  %v1682 = vpop.f32.mrb[0].mxu0
  %v1683 = vadd.f32 %v1579, %v1682
  %v1684 = vpop.f32.mrb[0].mxu0
  %1685 = vdwg.mxu0
  %1686 = vmatprep.subr.mxu0 0.0
  %v1687 = vand.u32 %v11, 4294901760
  %1688 = vmatpush1.msra.mxu0 %v1687
  %1689 = vmatprep.subr.mxu0 0.0
  %v1690 = vand.u32 %v12, 4294901760
  %1691 = vmatpush1.msra.mxu0 %v1690
  %1692 = vmatprep.subr.mxu0 0.0
  %v1693 = vand.u32 %v13, 4294901760
  %1694 = vmatpush1.msra.mxu0 %v1693
  %1695 = vmatprep.subr.mxu0 0.0
  %v1696 = vand.u32 %v14, 4294901760
  %1697 = vmatpush1.msra.mxu0 %v1696
  %1698 = vmatprep.subr.mxu0 0.0
  %v1699 = vand.u32 %v15, 4294901760
  %1700 = vmatpush1.msra.mxu0 %v1699
  %1701 = vmatprep.subr.mxu0 0.0
  %v1702 = vand.u32 %v16, 4294901760
  %1703 = vmatpush1.msra.mxu0 %v1702
  %1704 = vmatprep.subr.mxu0 0.0
  %v1705 = vand.u32 %v17, 4294901760
  %1706 = vmatpush1.msra.mxu0 %v1705
  %1707 = vmatprep.subr.mxu0 0.0
  %v1708 = vand.u32 %v18, 4294901760
  %1709 = vmatpush1.msra.mxu0 %v1708
  %1710 = vmatprep.subr.mxu0 0.0
  %v1711 = vand.u32 %v19, 4294901760
  %1712 = vmatpush1.msra.mxu0 %v1711
  %1713 = vmatprep.subr.mxu0 0.0
  %v1714 = vand.u32 %v20, 4294901760
  %1715 = vmatpush1.msra.mxu0 %v1714
  %1716 = vmatprep.subr.mxu0 0.0
  %v1717 = vand.u32 %v21, 4294901760
  %1718 = vmatpush1.msra.mxu0 %v1717
  %1719 = vmatprep.subr.mxu0 0.0
  %v1720 = vand.u32 %v22, 4294901760
  %1721 = vmatpush1.msra.mxu0 %v1720
  %1722 = vmatprep.subr.mxu0 0.0
  %v1723 = vand.u32 %v23, 4294901760
  %1724 = vmatpush1.msra.mxu0 %v1723
  %1725 = vmatprep.subr.mxu0 0.0
  %v1726 = vand.u32 %v24, 4294901760
  %1727 = vmatpush1.msra.mxu0 %v1726
  %1728 = vmatprep.subr.mxu0 0.0
  %v1729 = vand.u32 %v25, 4294901760
  %1730 = vmatpush1.msra.mxu0 %v1729
  %1731 = vmatprep.subr.mxu0 0.0
  %v1732 = vand.u32 %v26, 4294901760
  %1733 = vmatpush1.msra.mxu0 %v1732
  %1734 = vmatprep.subr.mxu0 0.0
  %1735 = vmatpush1.msra.mxu0 0.0
  %1736 = vmatprep.subr.mxu0 0.0
  %1737 = vmatpush1.msra.mxu0 0.0
  %1738 = vmatprep.subr.mxu0 0.0
  %1739 = vmatpush1.msra.mxu0 0.0
  %1740 = vmatprep.subr.mxu0 0.0
  %1741 = vmatpush1.msra.mxu0 0.0
  %1742 = vmatprep.subr.mxu0 0.0
  %1743 = vmatpush1.msra.mxu0 0.0
  %1744 = vmatprep.subr.mxu0 0.0
  %1745 = vmatpush1.msra.mxu0 0.0
  %1746 = vmatprep.subr.mxu0 0.0
  %1747 = vmatpush1.msra.mxu0 0.0
  %1748 = vmatprep.subr.mxu0 0.0
  %1749 = vmatpush1.msra.mxu0 0.0
  %1750 = vmatprep.subr.mxu0 0.0
  %1751 = vmatpush1.msra.mxu0 0.0
  %1752 = vmatprep.subr.mxu0 0.0
  %1753 = vmatpush1.msra.mxu0 0.0
  %1754 = vmatprep.subr.mxu0 0.0
  %1755 = vmatpush1.msra.mxu0 0.0
  %1756 = vmatprep.subr.mxu0 0.0
  %1757 = vmatpush1.msra.mxu0 0.0
  %1758 = vmatprep.subr.mxu0 0.0
  %1759 = vmatpush1.msra.mxu0 0.0
  %1760 = vmatprep.subr.mxu0 0.0
  %1761 = vmatpush1.msra.mxu0 0.0
  %1762 = vmatprep.subr.mxu0 0.0
  %1763 = vmatpush1.msra.mxu0 0.0
  %1764 = vmatprep.subr.mxu0 0.0
  %1765 = vmatpush1.msra.mxu0 0.0
  %1766 = vmatprep.mubr.f32.mxu0 0.0
  %v1767 = vand.u32 %v1339, 4294901760
  %v1768 = vsub.f32 %v1339, %v1767
  %v1769 = vand.u32 %v1768, 4294901760
  %1770 = vmatmul.mubr.f32.gmra.mrb[0].mxu0 %v1769
  %v1771 = vpop.f32.mrb[0].mxu0
  %v1772 = vadd.f32 %v1683, %v1771
  %v1773 = vpop.f32.mrb[0].mxu0
  %1774 = vdwg.mxu0
  %1775 = vmatprep.subr.mxu0 0.0
  %v1776 = vand.u32 %v11, 4294901760
  %v1777 = vsub.f32 %v11, %v1776
  %v1778 = vand.u32 %v1777, 4294901760
  %1779 = vmatpush1.msra.mxu0 %v1778
  %1780 = vmatprep.subr.mxu0 0.0
  %v1781 = vand.u32 %v12, 4294901760
  %v1782 = vsub.f32 %v12, %v1781
  %v1783 = vand.u32 %v1782, 4294901760
  %1784 = vmatpush1.msra.mxu0 %v1783
  %1785 = vmatprep.subr.mxu0 0.0
  %v1786 = vand.u32 %v13, 4294901760
  %v1787 = vsub.f32 %v13, %v1786
  %v1788 = vand.u32 %v1787, 4294901760
  %1789 = vmatpush1.msra.mxu0 %v1788
  %1790 = vmatprep.subr.mxu0 0.0
  %v1791 = vand.u32 %v14, 4294901760
  %v1792 = vsub.f32 %v14, %v1791
  %v1793 = vand.u32 %v1792, 4294901760
  %1794 = vmatpush1.msra.mxu0 %v1793
  %1795 = vmatprep.subr.mxu0 0.0
  %v1796 = vand.u32 %v15, 4294901760
  %v1797 = vsub.f32 %v15, %v1796
  %v1798 = vand.u32 %v1797, 4294901760
  %1799 = vmatpush1.msra.mxu0 %v1798
  %1800 = vmatprep.subr.mxu0 0.0
  %v1801 = vand.u32 %v16, 4294901760
  %v1802 = vsub.f32 %v16, %v1801
  %v1803 = vand.u32 %v1802, 4294901760
  %1804 = vmatpush1.msra.mxu0 %v1803
  %1805 = vmatprep.subr.mxu0 0.0
  %v1806 = vand.u32 %v17, 4294901760
  %v1807 = vsub.f32 %v17, %v1806
  %v1808 = vand.u32 %v1807, 4294901760
  %1809 = vmatpush1.msra.mxu0 %v1808
  %1810 = vmatprep.subr.mxu0 0.0
  %v1811 = vand.u32 %v18, 4294901760
  %v1812 = vsub.f32 %v18, %v1811
  %v1813 = vand.u32 %v1812, 4294901760
  %1814 = vmatpush1.msra.mxu0 %v1813
  %1815 = vmatprep.subr.mxu0 0.0
  %v1816 = vand.u32 %v19, 4294901760
  %v1817 = vsub.f32 %v19, %v1816
  %v1818 = vand.u32 %v1817, 4294901760
  %1819 = vmatpush1.msra.mxu0 %v1818
  %1820 = vmatprep.subr.mxu0 0.0
  %v1821 = vand.u32 %v20, 4294901760
  %v1822 = vsub.f32 %v20, %v1821
  %v1823 = vand.u32 %v1822, 4294901760
  %1824 = vmatpush1.msra.mxu0 %v1823
  %1825 = vmatprep.subr.mxu0 0.0
  %v1826 = vand.u32 %v21, 4294901760
  %v1827 = vsub.f32 %v21, %v1826
  %v1828 = vand.u32 %v1827, 4294901760
  %1829 = vmatpush1.msra.mxu0 %v1828
  %1830 = vmatprep.subr.mxu0 0.0
  %v1831 = vand.u32 %v22, 4294901760
  %v1832 = vsub.f32 %v22, %v1831
  %v1833 = vand.u32 %v1832, 4294901760
  %1834 = vmatpush1.msra.mxu0 %v1833
  %1835 = vmatprep.subr.mxu0 0.0
  %v1836 = vand.u32 %v23, 4294901760
  %v1837 = vsub.f32 %v23, %v1836
  %v1838 = vand.u32 %v1837, 4294901760
  %1839 = vmatpush1.msra.mxu0 %v1838
  %1840 = vmatprep.subr.mxu0 0.0
  %v1841 = vand.u32 %v24, 4294901760
  %v1842 = vsub.f32 %v24, %v1841
  %v1843 = vand.u32 %v1842, 4294901760
  %1844 = vmatpush1.msra.mxu0 %v1843
  %1845 = vmatprep.subr.mxu0 0.0
  %v1846 = vand.u32 %v25, 4294901760
  %v1847 = vsub.f32 %v25, %v1846
  %v1848 = vand.u32 %v1847, 4294901760
  %1849 = vmatpush1.msra.mxu0 %v1848
  %1850 = vmatprep.subr.mxu0 0.0
  %v1851 = vand.u32 %v26, 4294901760
  %v1852 = vsub.f32 %v26, %v1851
  %v1853 = vand.u32 %v1852, 4294901760
  %1854 = vmatpush1.msra.mxu0 %v1853
  %1855 = vmatprep.subr.mxu0 0.0
  %1856 = vmatpush1.msra.mxu0 0.0
  %1857 = vmatprep.subr.mxu0 0.0
  %1858 = vmatpush1.msra.mxu0 0.0
  %1859 = vmatprep.subr.mxu0 0.0
  %1860 = vmatpush1.msra.mxu0 0.0
  %1861 = vmatprep.subr.mxu0 0.0
  %1862 = vmatpush1.msra.mxu0 0.0
  %1863 = vmatprep.subr.mxu0 0.0
  %1864 = vmatpush1.msra.mxu0 0.0
  %1865 = vmatprep.subr.mxu0 0.0
  %1866 = vmatpush1.msra.mxu0 0.0
  %1867 = vmatprep.subr.mxu0 0.0
  %1868 = vmatpush1.msra.mxu0 0.0
  %1869 = vmatprep.subr.mxu0 0.0
  %1870 = vmatpush1.msra.mxu0 0.0
  %1871 = vmatprep.subr.mxu0 0.0
  %1872 = vmatpush1.msra.mxu0 0.0
  %1873 = vmatprep.subr.mxu0 0.0
  %1874 = vmatpush1.msra.mxu0 0.0
  %1875 = vmatprep.subr.mxu0 0.0
  %1876 = vmatpush1.msra.mxu0 0.0
  %1877 = vmatprep.subr.mxu0 0.0
  %1878 = vmatpush1.msra.mxu0 0.0
  %1879 = vmatprep.subr.mxu0 0.0
  %1880 = vmatpush1.msra.mxu0 0.0
  %1881 = vmatprep.subr.mxu0 0.0
  %1882 = vmatpush1.msra.mxu0 0.0
  %1883 = vmatprep.subr.mxu0 0.0
  %1884 = vmatpush1.msra.mxu0 0.0
  %1885 = vmatprep.subr.mxu0 0.0
  %1886 = vmatpush1.msra.mxu0 0.0
  %1887 = vmatprep.mubr.f32.mxu0 0.0
  %v1888 = vand.u32 %v1339, 4294901760
  %1889 = vmatmul.mubr.f32.gmra.mrb[0].mxu0 %v1888
  %v1890 = vpop.f32.mrb[0].mxu0
  %v1891 = vadd.f32 %v1772, %v1890
  %v1892 = vpop.f32.mrb[0].mxu0
  %1893 = vdwg.mxu0
  %1894 = vmatprep.subr.mxu0 0.0
  %v1895 = vand.u32 %v11, 4294901760
  %1896 = vmatpush1.msra.mxu0 %v1895
  %1897 = vmatprep.subr.mxu0 0.0
  %v1898 = vand.u32 %v12, 4294901760
  %1899 = vmatpush1.msra.mxu0 %v1898
  %1900 = vmatprep.subr.mxu0 0.0
  %v1901 = vand.u32 %v13, 4294901760
  %1902 = vmatpush1.msra.mxu0 %v1901
  %1903 = vmatprep.subr.mxu0 0.0
  %v1904 = vand.u32 %v14, 4294901760
  %1905 = vmatpush1.msra.mxu0 %v1904
  %1906 = vmatprep.subr.mxu0 0.0
  %v1907 = vand.u32 %v15, 4294901760
  %1908 = vmatpush1.msra.mxu0 %v1907
  %1909 = vmatprep.subr.mxu0 0.0
  %v1910 = vand.u32 %v16, 4294901760
  %1911 = vmatpush1.msra.mxu0 %v1910
  %1912 = vmatprep.subr.mxu0 0.0
  %v1913 = vand.u32 %v17, 4294901760
  %1914 = vmatpush1.msra.mxu0 %v1913
  %1915 = vmatprep.subr.mxu0 0.0
  %v1916 = vand.u32 %v18, 4294901760
  %1917 = vmatpush1.msra.mxu0 %v1916
  %1918 = vmatprep.subr.mxu0 0.0
  %v1919 = vand.u32 %v19, 4294901760
  %1920 = vmatpush1.msra.mxu0 %v1919
  %1921 = vmatprep.subr.mxu0 0.0
  %v1922 = vand.u32 %v20, 4294901760
  %1923 = vmatpush1.msra.mxu0 %v1922
  %1924 = vmatprep.subr.mxu0 0.0
  %v1925 = vand.u32 %v21, 4294901760
  %1926 = vmatpush1.msra.mxu0 %v1925
  %1927 = vmatprep.subr.mxu0 0.0
  %v1928 = vand.u32 %v22, 4294901760
  %1929 = vmatpush1.msra.mxu0 %v1928
  %1930 = vmatprep.subr.mxu0 0.0
  %v1931 = vand.u32 %v23, 4294901760
  %1932 = vmatpush1.msra.mxu0 %v1931
  %1933 = vmatprep.subr.mxu0 0.0
  %v1934 = vand.u32 %v24, 4294901760
  %1935 = vmatpush1.msra.mxu0 %v1934
  %1936 = vmatprep.subr.mxu0 0.0
  %v1937 = vand.u32 %v25, 4294901760
  %1938 = vmatpush1.msra.mxu0 %v1937
  %1939 = vmatprep.subr.mxu0 0.0
  %v1940 = vand.u32 %v26, 4294901760
  %1941 = vmatpush1.msra.mxu0 %v1940
  %1942 = vmatprep.subr.mxu0 0.0
  %1943 = vmatpush1.msra.mxu0 0.0
  %1944 = vmatprep.subr.mxu0 0.0
  %1945 = vmatpush1.msra.mxu0 0.0
  %1946 = vmatprep.subr.mxu0 0.0
  %1947 = vmatpush1.msra.mxu0 0.0
  %1948 = vmatprep.subr.mxu0 0.0
  %1949 = vmatpush1.msra.mxu0 0.0
  %1950 = vmatprep.subr.mxu0 0.0
  %1951 = vmatpush1.msra.mxu0 0.0
  %1952 = vmatprep.subr.mxu0 0.0
  %1953 = vmatpush1.msra.mxu0 0.0
  %1954 = vmatprep.subr.mxu0 0.0
  %1955 = vmatpush1.msra.mxu0 0.0
  %1956 = vmatprep.subr.mxu0 0.0
  %1957 = vmatpush1.msra.mxu0 0.0
  %1958 = vmatprep.subr.mxu0 0.0
  %1959 = vmatpush1.msra.mxu0 0.0
  %1960 = vmatprep.subr.mxu0 0.0
  %1961 = vmatpush1.msra.mxu0 0.0
  %1962 = vmatprep.subr.mxu0 0.0
  %1963 = vmatpush1.msra.mxu0 0.0
  %1964 = vmatprep.subr.mxu0 0.0
  %1965 = vmatpush1.msra.mxu0 0.0
  %1966 = vmatprep.subr.mxu0 0.0
  %1967 = vmatpush1.msra.mxu0 0.0
  %1968 = vmatprep.subr.mxu0 0.0
  %1969 = vmatpush1.msra.mxu0 0.0
  %1970 = vmatprep.subr.mxu0 0.0
  %1971 = vmatpush1.msra.mxu0 0.0
  %1972 = vmatprep.subr.mxu0 0.0
  %1973 = vmatpush1.msra.mxu0 0.0
  %1974 = vmatprep.mubr.f32.mxu0 0.0
  %v1975 = vand.u32 %v1339, 4294901760
  %1976 = vmatmul.mubr.f32.gmra.mrb[0].mxu0 %v1975
  %v1977 = vpop.f32.mrb[0].mxu0
  %v1978 = vadd.f32 %v1891, %v1977
  %v1979 = vpop.f32.mrb[0].mxu0
  %1980 = vdwg.mxu0
  %1982 = vrot.lane.b32.xlu0 %v1978, 64
  %v1983 = vpop.permute.xlu0 %1982
  %vm1985 = vcmask 785920
  %1986 = vst.msk [vmem:[%s2] sm:$0xff] %vm1985, %v1983
  %v1987 = vld [vmem:[%s0] sm:$0xff]
  %1988 = vset.pattern.permute.xlu0 3
  %1989 = vperm.xlu0 %1988, %v1987
  %v1990 = vpop.permute.xlu0 %1989
  %vm1991 = vcmp.eq.s32.totalorder %v1990, %v28
  %v1992 = vsel %vm1991, 1, 0
  %v1993 = vcvt.s32.f32 %v1992
  %1994 = vmatprep.subr.mxu0 0.0
  %v1995 = vand.u32 %v11, 4294901760
  %1996 = vmatpush1.msra.mxu0 %v1995
  %1997 = vmatprep.subr.mxu0 0.0
  %v1998 = vand.u32 %v12, 4294901760
  %1999 = vmatpush1.msra.mxu0 %v1998
  %2000 = vmatprep.subr.mxu0 0.0
  %v2001 = vand.u32 %v13, 4294901760
  %2002 = vmatpush1.msra.mxu0 %v2001
  %2003 = vmatprep.subr.mxu0 0.0
  %v2004 = vand.u32 %v14, 4294901760
  %2005 = vmatpush1.msra.mxu0 %v2004
  %2006 = vmatprep.subr.mxu0 0.0
  %v2007 = vand.u32 %v15, 4294901760
  %2008 = vmatpush1.msra.mxu0 %v2007
  %2009 = vmatprep.subr.mxu0 0.0
  %v2010 = vand.u32 %v16, 4294901760
  %2011 = vmatpush1.msra.mxu0 %v2010
  %2012 = vmatprep.subr.mxu0 0.0
  %v2013 = vand.u32 %v17, 4294901760
  %2014 = vmatpush1.msra.mxu0 %v2013
  %2015 = vmatprep.subr.mxu0 0.0
  %v2016 = vand.u32 %v18, 4294901760
  %2017 = vmatpush1.msra.mxu0 %v2016
  %2018 = vmatprep.subr.mxu0 0.0
  %v2019 = vand.u32 %v19, 4294901760
  %2020 = vmatpush1.msra.mxu0 %v2019
  %2021 = vmatprep.subr.mxu0 0.0
  %v2022 = vand.u32 %v20, 4294901760
  %2023 = vmatpush1.msra.mxu0 %v2022
  %2024 = vmatprep.subr.mxu0 0.0
  %v2025 = vand.u32 %v21, 4294901760
  %2026 = vmatpush1.msra.mxu0 %v2025
  %2027 = vmatprep.subr.mxu0 0.0
  %v2028 = vand.u32 %v22, 4294901760
  %2029 = vmatpush1.msra.mxu0 %v2028
  %2030 = vmatprep.subr.mxu0 0.0
  %v2031 = vand.u32 %v23, 4294901760
  %2032 = vmatpush1.msra.mxu0 %v2031
  %2033 = vmatprep.subr.mxu0 0.0
  %v2034 = vand.u32 %v24, 4294901760
  %2035 = vmatpush1.msra.mxu0 %v2034
  %2036 = vmatprep.subr.mxu0 0.0
  %v2037 = vand.u32 %v25, 4294901760
  %2038 = vmatpush1.msra.mxu0 %v2037
  %2039 = vmatprep.subr.mxu0 0.0
  %v2040 = vand.u32 %v26, 4294901760
  %2041 = vmatpush1.msra.mxu0 %v2040
  %2042 = vmatprep.subr.mxu0 0.0
  %2043 = vmatpush1.msra.mxu0 0.0
  %2044 = vmatprep.subr.mxu0 0.0
  %2045 = vmatpush1.msra.mxu0 0.0
  %2046 = vmatprep.subr.mxu0 0.0
  %2047 = vmatpush1.msra.mxu0 0.0
  %2048 = vmatprep.subr.mxu0 0.0
  %2049 = vmatpush1.msra.mxu0 0.0
  %2050 = vmatprep.subr.mxu0 0.0
  %2051 = vmatpush1.msra.mxu0 0.0
  %2052 = vmatprep.subr.mxu0 0.0
  %2053 = vmatpush1.msra.mxu0 0.0
  %2054 = vmatprep.subr.mxu0 0.0
  %2055 = vmatpush1.msra.mxu0 0.0
  %2056 = vmatprep.subr.mxu0 0.0
  %2057 = vmatpush1.msra.mxu0 0.0
  %2058 = vmatprep.subr.mxu0 0.0
  %2059 = vmatpush1.msra.mxu0 0.0
  %2060 = vmatprep.subr.mxu0 0.0
  %2061 = vmatpush1.msra.mxu0 0.0
  %2062 = vmatprep.subr.mxu0 0.0
  %2063 = vmatpush1.msra.mxu0 0.0
  %2064 = vmatprep.subr.mxu0 0.0
  %2065 = vmatpush1.msra.mxu0 0.0
  %2066 = vmatprep.subr.mxu0 0.0
  %2067 = vmatpush1.msra.mxu0 0.0
  %2068 = vmatprep.subr.mxu0 0.0
  %2069 = vmatpush1.msra.mxu0 0.0
  %2070 = vmatprep.subr.mxu0 0.0
  %2071 = vmatpush1.msra.mxu0 0.0
  %2072 = vmatprep.subr.mxu0 0.0
  %2073 = vmatpush1.msra.mxu0 0.0
  %2074 = vmatprep.mubr.f32.mxu0 0.0
  %v2075 = vand.u32 %v1993, 4294901760
  %v2076 = vsub.f32 %v1993, %v2075
  %v2077 = vand.u32 %v2076, 4294901760
  %v2078 = vsub.f32 %v2076, %v2077
  %v2079 = vand.u32 %v2078, 4294901760
  %2080 = vmatmul.mubr.f32.gmra.mrb[0].mxu0 %v2079
  %v2081 = vpop.f32.mrb[0].mxu0
  %v2082 = vadd.f32 0.0, %v2081
  %v2083 = vpop.f32.mrb[0].mxu0
  %2084 = vdwg.mxu0
  %2085 = vmatprep.subr.mxu0 0.0
  %v2086 = vand.u32 %v11, 4294901760
  %v2087 = vsub.f32 %v11, %v2086
  %v2088 = vand.u32 %v2087, 4294901760
  %v2089 = vsub.f32 %v2087, %v2088
  %v2090 = vand.u32 %v2089, 4294901760
  %2091 = vmatpush1.msra.mxu0 %v2090
  %2092 = vmatprep.subr.mxu0 0.0
  %v2093 = vand.u32 %v12, 4294901760
  %v2094 = vsub.f32 %v12, %v2093
  %v2095 = vand.u32 %v2094, 4294901760
  %v2096 = vsub.f32 %v2094, %v2095
  %v2097 = vand.u32 %v2096, 4294901760
  %2098 = vmatpush1.msra.mxu0 %v2097
  %2099 = vmatprep.subr.mxu0 0.0
  %v2100 = vand.u32 %v13, 4294901760
  %v2101 = vsub.f32 %v13, %v2100
  %v2102 = vand.u32 %v2101, 4294901760
  %v2103 = vsub.f32 %v2101, %v2102
  %v2104 = vand.u32 %v2103, 4294901760
  %2105 = vmatpush1.msra.mxu0 %v2104
  %2106 = vmatprep.subr.mxu0 0.0
  %v2107 = vand.u32 %v14, 4294901760
  %v2108 = vsub.f32 %v14, %v2107
  %v2109 = vand.u32 %v2108, 4294901760
  %v2110 = vsub.f32 %v2108, %v2109
  %v2111 = vand.u32 %v2110, 4294901760
  %2112 = vmatpush1.msra.mxu0 %v2111
  %2113 = vmatprep.subr.mxu0 0.0
  %v2114 = vand.u32 %v15, 4294901760
  %v2115 = vsub.f32 %v15, %v2114
  %v2116 = vand.u32 %v2115, 4294901760
  %v2117 = vsub.f32 %v2115, %v2116
  %v2118 = vand.u32 %v2117, 4294901760
  %2119 = vmatpush1.msra.mxu0 %v2118
  %2120 = vmatprep.subr.mxu0 0.0
  %v2121 = vand.u32 %v16, 4294901760
  %v2122 = vsub.f32 %v16, %v2121
  %v2123 = vand.u32 %v2122, 4294901760
  %v2124 = vsub.f32 %v2122, %v2123
  %v2125 = vand.u32 %v2124, 4294901760
  %2126 = vmatpush1.msra.mxu0 %v2125
  %2127 = vmatprep.subr.mxu0 0.0
  %v2128 = vand.u32 %v17, 4294901760
  %v2129 = vsub.f32 %v17, %v2128
  %v2130 = vand.u32 %v2129, 4294901760
  %v2131 = vsub.f32 %v2129, %v2130
  %v2132 = vand.u32 %v2131, 4294901760
  %2133 = vmatpush1.msra.mxu0 %v2132
  %2134 = vmatprep.subr.mxu0 0.0
  %v2135 = vand.u32 %v18, 4294901760
  %v2136 = vsub.f32 %v18, %v2135
  %v2137 = vand.u32 %v2136, 4294901760
  %v2138 = vsub.f32 %v2136, %v2137
  %v2139 = vand.u32 %v2138, 4294901760
  %2140 = vmatpush1.msra.mxu0 %v2139
  %2141 = vmatprep.subr.mxu0 0.0
  %v2142 = vand.u32 %v19, 4294901760
  %v2143 = vsub.f32 %v19, %v2142
  %v2144 = vand.u32 %v2143, 4294901760
  %v2145 = vsub.f32 %v2143, %v2144
  %v2146 = vand.u32 %v2145, 4294901760
  %2147 = vmatpush1.msra.mxu0 %v2146
  %2148 = vmatprep.subr.mxu0 0.0
  %v2149 = vand.u32 %v20, 4294901760
  %v2150 = vsub.f32 %v20, %v2149
  %v2151 = vand.u32 %v2150, 4294901760
  %v2152 = vsub.f32 %v2150, %v2151
  %v2153 = vand.u32 %v2152, 4294901760
  %2154 = vmatpush1.msra.mxu0 %v2153
  %2155 = vmatprep.subr.mxu0 0.0
  %v2156 = vand.u32 %v21, 4294901760
  %v2157 = vsub.f32 %v21, %v2156
  %v2158 = vand.u32 %v2157, 4294901760
  %v2159 = vsub.f32 %v2157, %v2158
  %v2160 = vand.u32 %v2159, 4294901760
  %2161 = vmatpush1.msra.mxu0 %v2160
  %2162 = vmatprep.subr.mxu0 0.0
  %v2163 = vand.u32 %v22, 4294901760
  %v2164 = vsub.f32 %v22, %v2163
  %v2165 = vand.u32 %v2164, 4294901760
  %v2166 = vsub.f32 %v2164, %v2165
  %v2167 = vand.u32 %v2166, 4294901760
  %2168 = vmatpush1.msra.mxu0 %v2167
  %2169 = vmatprep.subr.mxu0 0.0
  %v2170 = vand.u32 %v23, 4294901760
  %v2171 = vsub.f32 %v23, %v2170
  %v2172 = vand.u32 %v2171, 4294901760
  %v2173 = vsub.f32 %v2171, %v2172
  %v2174 = vand.u32 %v2173, 4294901760
  %2175 = vmatpush1.msra.mxu0 %v2174
  %2176 = vmatprep.subr.mxu0 0.0
  %v2177 = vand.u32 %v24, 4294901760
  %v2178 = vsub.f32 %v24, %v2177
  %v2179 = vand.u32 %v2178, 4294901760
  %v2180 = vsub.f32 %v2178, %v2179
  %v2181 = vand.u32 %v2180, 4294901760
  %2182 = vmatpush1.msra.mxu0 %v2181
  %2183 = vmatprep.subr.mxu0 0.0
  %v2184 = vand.u32 %v25, 4294901760
  %v2185 = vsub.f32 %v25, %v2184
  %v2186 = vand.u32 %v2185, 4294901760
  %v2187 = vsub.f32 %v2185, %v2186
  %v2188 = vand.u32 %v2187, 4294901760
  %2189 = vmatpush1.msra.mxu0 %v2188
  %2190 = vmatprep.subr.mxu0 0.0
  %v2191 = vand.u32 %v26, 4294901760
  %v2192 = vsub.f32 %v26, %v2191
  %v2193 = vand.u32 %v2192, 4294901760
  %v2194 = vsub.f32 %v2192, %v2193
  %v2195 = vand.u32 %v2194, 4294901760
  %2196 = vmatpush1.msra.mxu0 %v2195
  %2197 = vmatprep.subr.mxu0 0.0
  %2198 = vmatpush1.msra.mxu0 0.0
  %2199 = vmatprep.subr.mxu0 0.0
  %2200 = vmatpush1.msra.mxu0 0.0
  %2201 = vmatprep.subr.mxu0 0.0
  %2202 = vmatpush1.msra.mxu0 0.0
  %2203 = vmatprep.subr.mxu0 0.0
  %2204 = vmatpush1.msra.mxu0 0.0
  %2205 = vmatprep.subr.mxu0 0.0
  %2206 = vmatpush1.msra.mxu0 0.0
  %2207 = vmatprep.subr.mxu0 0.0
  %2208 = vmatpush1.msra.mxu0 0.0
  %2209 = vmatprep.subr.mxu0 0.0
  %2210 = vmatpush1.msra.mxu0 0.0
  %2211 = vmatprep.subr.mxu0 0.0
  %2212 = vmatpush1.msra.mxu0 0.0
  %2213 = vmatprep.subr.mxu0 0.0
  %2214 = vmatpush1.msra.mxu0 0.0
  %2215 = vmatprep.subr.mxu0 0.0
  %2216 = vmatpush1.msra.mxu0 0.0
  %2217 = vmatprep.subr.mxu0 0.0
  %2218 = vmatpush1.msra.mxu0 0.0
  %2219 = vmatprep.subr.mxu0 0.0
  %2220 = vmatpush1.msra.mxu0 0.0
  %2221 = vmatprep.subr.mxu0 0.0
  %2222 = vmatpush1.msra.mxu0 0.0
  %2223 = vmatprep.subr.mxu0 0.0
  %2224 = vmatpush1.msra.mxu0 0.0
  %2225 = vmatprep.subr.mxu0 0.0
  %2226 = vmatpush1.msra.mxu0 0.0
  %2227 = vmatprep.subr.mxu0 0.0
  %2228 = vmatpush1.msra.mxu0 0.0
  %2229 = vmatprep.mubr.f32.mxu0 0.0
  %v2230 = vand.u32 %v1993, 4294901760
  %2231 = vmatmul.mubr.f32.gmra.mrb[0].mxu0 %v2230
  %v2232 = vpop.f32.mrb[0].mxu0
  %v2233 = vadd.f32 %v2082, %v2232
  %v2234 = vpop.f32.mrb[0].mxu0
  %2235 = vdwg.mxu0
  %2236 = vmatprep.subr.mxu0 0.0
  %v2237 = vand.u32 %v11, 4294901760
  %v2238 = vsub.f32 %v11, %v2237
  %2239 = vmatpush1.msra.mxu0 %v2238
  %2240 = vmatprep.subr.mxu0 0.0
  %v2241 = vand.u32 %v12, 4294901760
  %v2242 = vsub.f32 %v12, %v2241
  %2243 = vmatpush1.msra.mxu0 %v2242
  %2244 = vmatprep.subr.mxu0 0.0
  %v2245 = vand.u32 %v13, 4294901760
  %v2246 = vsub.f32 %v13, %v2245
  %2247 = vmatpush1.msra.mxu0 %v2246
  %2248 = vmatprep.subr.mxu0 0.0
  %v2249 = vand.u32 %v14, 4294901760
  %v2250 = vsub.f32 %v14, %v2249
  %2251 = vmatpush1.msra.mxu0 %v2250
  %2252 = vmatprep.subr.mxu0 0.0
  %v2253 = vand.u32 %v15, 4294901760
  %v2254 = vsub.f32 %v15, %v2253
  %2255 = vmatpush1.msra.mxu0 %v2254
  %2256 = vmatprep.subr.mxu0 0.0
  %v2257 = vand.u32 %v16, 4294901760
  %v2258 = vsub.f32 %v16, %v2257
  %2259 = vmatpush1.msra.mxu0 %v2258
  %2260 = vmatprep.subr.mxu0 0.0
  %v2261 = vand.u32 %v17, 4294901760
  %v2262 = vsub.f32 %v17, %v2261
  %2263 = vmatpush1.msra.mxu0 %v2262
  %2264 = vmatprep.subr.mxu0 0.0
  %v2265 = vand.u32 %v18, 4294901760
  %v2266 = vsub.f32 %v18, %v2265
  %2267 = vmatpush1.msra.mxu0 %v2266
  %2268 = vmatprep.subr.mxu0 0.0
  %v2269 = vand.u32 %v19, 4294901760
  %v2270 = vsub.f32 %v19, %v2269
  %2271 = vmatpush1.msra.mxu0 %v2270
  %2272 = vmatprep.subr.mxu0 0.0
  %v2273 = vand.u32 %v20, 4294901760
  %v2274 = vsub.f32 %v20, %v2273
  %2275 = vmatpush1.msra.mxu0 %v2274
  %2276 = vmatprep.subr.mxu0 0.0
  %v2277 = vand.u32 %v21, 4294901760
  %v2278 = vsub.f32 %v21, %v2277
  %2279 = vmatpush1.msra.mxu0 %v2278
  %2280 = vmatprep.subr.mxu0 0.0
  %v2281 = vand.u32 %v22, 4294901760
  %v2282 = vsub.f32 %v22, %v2281
  %2283 = vmatpush1.msra.mxu0 %v2282
  %2284 = vmatprep.subr.mxu0 0.0
  %v2285 = vand.u32 %v23, 4294901760
  %v2286 = vsub.f32 %v23, %v2285
  %2287 = vmatpush1.msra.mxu0 %v2286
  %2288 = vmatprep.subr.mxu0 0.0
  %v2289 = vand.u32 %v24, 4294901760
  %v2290 = vsub.f32 %v24, %v2289
  %2291 = vmatpush1.msra.mxu0 %v2290
  %2292 = vmatprep.subr.mxu0 0.0
  %v2293 = vand.u32 %v25, 4294901760
  %v2294 = vsub.f32 %v25, %v2293
  %2295 = vmatpush1.msra.mxu0 %v2294
  %2296 = vmatprep.subr.mxu0 0.0
  %v2297 = vand.u32 %v26, 4294901760
  %v2298 = vsub.f32 %v26, %v2297
  %2299 = vmatpush1.msra.mxu0 %v2298
  %2300 = vmatprep.subr.mxu0 0.0
  %2301 = vmatpush1.msra.mxu0 0.0
  %2302 = vmatprep.subr.mxu0 0.0
  %2303 = vmatpush1.msra.mxu0 0.0
  %2304 = vmatprep.subr.mxu0 0.0
  %2305 = vmatpush1.msra.mxu0 0.0
  %2306 = vmatprep.subr.mxu0 0.0
  %2307 = vmatpush1.msra.mxu0 0.0
  %2308 = vmatprep.subr.mxu0 0.0
  %2309 = vmatpush1.msra.mxu0 0.0
  %2310 = vmatprep.subr.mxu0 0.0
  %2311 = vmatpush1.msra.mxu0 0.0
  %2312 = vmatprep.subr.mxu0 0.0
  %2313 = vmatpush1.msra.mxu0 0.0
  %2314 = vmatprep.subr.mxu0 0.0
  %2315 = vmatpush1.msra.mxu0 0.0
  %2316 = vmatprep.subr.mxu0 0.0
  %2317 = vmatpush1.msra.mxu0 0.0
  %2318 = vmatprep.subr.mxu0 0.0
  %2319 = vmatpush1.msra.mxu0 0.0
  %2320 = vmatprep.subr.mxu0 0.0
  %2321 = vmatpush1.msra.mxu0 0.0
  %2322 = vmatprep.subr.mxu0 0.0
  %2323 = vmatpush1.msra.mxu0 0.0
  %2324 = vmatprep.subr.mxu0 0.0
  %2325 = vmatpush1.msra.mxu0 0.0
  %2326 = vmatprep.subr.mxu0 0.0
  %2327 = vmatpush1.msra.mxu0 0.0
  %2328 = vmatprep.subr.mxu0 0.0
  %2329 = vmatpush1.msra.mxu0 0.0
  %2330 = vmatprep.subr.mxu0 0.0
  %2331 = vmatpush1.msra.mxu0 0.0
  %2332 = vmatprep.mubr.f32.mxu0 0.0
  %v2333 = vand.u32 %v1993, 4294901760
  %v2334 = vsub.f32 %v1993, %v2333
  %2335 = vmatmul.mubr.f32.gmra.mrb[0].mxu0 %v2334
  %v2336 = vpop.f32.mrb[0].mxu0
  %v2337 = vadd.f32 %v2233, %v2336
  %v2338 = vpop.f32.mrb[0].mxu0
  %2339 = vdwg.mxu0
  %2340 = vmatprep.subr.mxu0 0.0
  %v2341 = vand.u32 %v11, 4294901760
  %2342 = vmatpush1.msra.mxu0 %v2341
  %2343 = vmatprep.subr.mxu0 0.0
  %v2344 = vand.u32 %v12, 4294901760
  %2345 = vmatpush1.msra.mxu0 %v2344
  %2346 = vmatprep.subr.mxu0 0.0
  %v2347 = vand.u32 %v13, 4294901760
  %2348 = vmatpush1.msra.mxu0 %v2347
  %2349 = vmatprep.subr.mxu0 0.0
  %v2350 = vand.u32 %v14, 4294901760
  %2351 = vmatpush1.msra.mxu0 %v2350
  %2352 = vmatprep.subr.mxu0 0.0
  %v2353 = vand.u32 %v15, 4294901760
  %2354 = vmatpush1.msra.mxu0 %v2353
  %2355 = vmatprep.subr.mxu0 0.0
  %v2356 = vand.u32 %v16, 4294901760
  %2357 = vmatpush1.msra.mxu0 %v2356
  %2358 = vmatprep.subr.mxu0 0.0
  %v2359 = vand.u32 %v17, 4294901760
  %2360 = vmatpush1.msra.mxu0 %v2359
  %2361 = vmatprep.subr.mxu0 0.0
  %v2362 = vand.u32 %v18, 4294901760
  %2363 = vmatpush1.msra.mxu0 %v2362
  %2364 = vmatprep.subr.mxu0 0.0
  %v2365 = vand.u32 %v19, 4294901760
  %2366 = vmatpush1.msra.mxu0 %v2365
  %2367 = vmatprep.subr.mxu0 0.0
  %v2368 = vand.u32 %v20, 4294901760
  %2369 = vmatpush1.msra.mxu0 %v2368
  %2370 = vmatprep.subr.mxu0 0.0
  %v2371 = vand.u32 %v21, 4294901760
  %2372 = vmatpush1.msra.mxu0 %v2371
  %2373 = vmatprep.subr.mxu0 0.0
  %v2374 = vand.u32 %v22, 4294901760
  %2375 = vmatpush1.msra.mxu0 %v2374
  %2376 = vmatprep.subr.mxu0 0.0
  %v2377 = vand.u32 %v23, 4294901760
  %2378 = vmatpush1.msra.mxu0 %v2377
  %2379 = vmatprep.subr.mxu0 0.0
  %v2380 = vand.u32 %v24, 4294901760
  %2381 = vmatpush1.msra.mxu0 %v2380
  %2382 = vmatprep.subr.mxu0 0.0
  %v2383 = vand.u32 %v25, 4294901760
  %2384 = vmatpush1.msra.mxu0 %v2383
  %2385 = vmatprep.subr.mxu0 0.0
  %v2386 = vand.u32 %v26, 4294901760
  %2387 = vmatpush1.msra.mxu0 %v2386
  %2388 = vmatprep.subr.mxu0 0.0
  %2389 = vmatpush1.msra.mxu0 0.0
  %2390 = vmatprep.subr.mxu0 0.0
  %2391 = vmatpush1.msra.mxu0 0.0
  %2392 = vmatprep.subr.mxu0 0.0
  %2393 = vmatpush1.msra.mxu0 0.0
  %2394 = vmatprep.subr.mxu0 0.0
  %2395 = vmatpush1.msra.mxu0 0.0
  %2396 = vmatprep.subr.mxu0 0.0
  %2397 = vmatpush1.msra.mxu0 0.0
  %2398 = vmatprep.subr.mxu0 0.0
  %2399 = vmatpush1.msra.mxu0 0.0
  %2400 = vmatprep.subr.mxu0 0.0
  %2401 = vmatpush1.msra.mxu0 0.0
  %2402 = vmatprep.subr.mxu0 0.0
  %2403 = vmatpush1.msra.mxu0 0.0
  %2404 = vmatprep.subr.mxu0 0.0
  %2405 = vmatpush1.msra.mxu0 0.0
  %2406 = vmatprep.subr.mxu0 0.0
  %2407 = vmatpush1.msra.mxu0 0.0
  %2408 = vmatprep.subr.mxu0 0.0
  %2409 = vmatpush1.msra.mxu0 0.0
  %2410 = vmatprep.subr.mxu0 0.0
  %2411 = vmatpush1.msra.mxu0 0.0
  %2412 = vmatprep.subr.mxu0 0.0
  %2413 = vmatpush1.msra.mxu0 0.0
  %2414 = vmatprep.subr.mxu0 0.0
  %2415 = vmatpush1.msra.mxu0 0.0
  %2416 = vmatprep.subr.mxu0 0.0
  %2417 = vmatpush1.msra.mxu0 0.0
  %2418 = vmatprep.subr.mxu0 0.0
  %2419 = vmatpush1.msra.mxu0 0.0
  %2420 = vmatprep.mubr.f32.mxu0 0.0
  %v2421 = vand.u32 %v1993, 4294901760
  %v2422 = vsub.f32 %v1993, %v2421
  %v2423 = vand.u32 %v2422, 4294901760
  %2424 = vmatmul.mubr.f32.gmra.mrb[0].mxu0 %v2423
  %v2425 = vpop.f32.mrb[0].mxu0
  %v2426 = vadd.f32 %v2337, %v2425
  %v2427 = vpop.f32.mrb[0].mxu0
  %2428 = vdwg.mxu0
  %2429 = vmatprep.subr.mxu0 0.0
  %v2430 = vand.u32 %v11, 4294901760
  %v2431 = vsub.f32 %v11, %v2430
  %v2432 = vand.u32 %v2431, 4294901760
  %2433 = vmatpush1.msra.mxu0 %v2432
  %2434 = vmatprep.subr.mxu0 0.0
  %v2435 = vand.u32 %v12, 4294901760
  %v2436 = vsub.f32 %v12, %v2435
  %v2437 = vand.u32 %v2436, 4294901760
  %2438 = vmatpush1.msra.mxu0 %v2437
  %2439 = vmatprep.subr.mxu0 0.0
  %v2440 = vand.u32 %v13, 4294901760
  %v2441 = vsub.f32 %v13, %v2440
  %v2442 = vand.u32 %v2441, 4294901760
  %2443 = vmatpush1.msra.mxu0 %v2442
  %2444 = vmatprep.subr.mxu0 0.0
  %v2445 = vand.u32 %v14, 4294901760
  %v2446 = vsub.f32 %v14, %v2445
  %v2447 = vand.u32 %v2446, 4294901760
  %2448 = vmatpush1.msra.mxu0 %v2447
  %2449 = vmatprep.subr.mxu0 0.0
  %v2450 = vand.u32 %v15, 4294901760
  %v2451 = vsub.f32 %v15, %v2450
  %v2452 = vand.u32 %v2451, 4294901760
  %2453 = vmatpush1.msra.mxu0 %v2452
  %2454 = vmatprep.subr.mxu0 0.0
  %v2455 = vand.u32 %v16, 4294901760
  %v2456 = vsub.f32 %v16, %v2455
  %v2457 = vand.u32 %v2456, 4294901760
  %2458 = vmatpush1.msra.mxu0 %v2457
  %2459 = vmatprep.subr.mxu0 0.0
  %v2460 = vand.u32 %v17, 4294901760
  %v2461 = vsub.f32 %v17, %v2460
  %v2462 = vand.u32 %v2461, 4294901760
  %2463 = vmatpush1.msra.mxu0 %v2462
  %2464 = vmatprep.subr.mxu0 0.0
  %v2465 = vand.u32 %v18, 4294901760
  %v2466 = vsub.f32 %v18, %v2465
  %v2467 = vand.u32 %v2466, 4294901760
  %2468 = vmatpush1.msra.mxu0 %v2467
  %2469 = vmatprep.subr.mxu0 0.0
  %v2470 = vand.u32 %v19, 4294901760
  %v2471 = vsub.f32 %v19, %v2470
  %v2472 = vand.u32 %v2471, 4294901760
  %2473 = vmatpush1.msra.mxu0 %v2472
  %2474 = vmatprep.subr.mxu0 0.0
  %v2475 = vand.u32 %v20, 4294901760
  %v2476 = vsub.f32 %v20, %v2475
  %v2477 = vand.u32 %v2476, 4294901760
  %2478 = vmatpush1.msra.mxu0 %v2477
  %2479 = vmatprep.subr.mxu0 0.0
  %v2480 = vand.u32 %v21, 4294901760
  %v2481 = vsub.f32 %v21, %v2480
  %v2482 = vand.u32 %v2481, 4294901760
  %2483 = vmatpush1.msra.mxu0 %v2482
  %2484 = vmatprep.subr.mxu0 0.0
  %v2485 = vand.u32 %v22, 4294901760
  %v2486 = vsub.f32 %v22, %v2485
  %v2487 = vand.u32 %v2486, 4294901760
  %2488 = vmatpush1.msra.mxu0 %v2487
  %2489 = vmatprep.subr.mxu0 0.0
  %v2490 = vand.u32 %v23, 4294901760
  %v2491 = vsub.f32 %v23, %v2490
  %v2492 = vand.u32 %v2491, 4294901760
  %2493 = vmatpush1.msra.mxu0 %v2492
  %2494 = vmatprep.subr.mxu0 0.0
  %v2495 = vand.u32 %v24, 4294901760
  %v2496 = vsub.f32 %v24, %v2495
  %v2497 = vand.u32 %v2496, 4294901760
  %2498 = vmatpush1.msra.mxu0 %v2497
  %2499 = vmatprep.subr.mxu0 0.0
  %v2500 = vand.u32 %v25, 4294901760
  %v2501 = vsub.f32 %v25, %v2500
  %v2502 = vand.u32 %v2501, 4294901760
  %2503 = vmatpush1.msra.mxu0 %v2502
  %2504 = vmatprep.subr.mxu0 0.0
  %v2505 = vand.u32 %v26, 4294901760
  %v2506 = vsub.f32 %v26, %v2505
  %v2507 = vand.u32 %v2506, 4294901760
  %2508 = vmatpush1.msra.mxu0 %v2507
  %2509 = vmatprep.subr.mxu0 0.0
  %2510 = vmatpush1.msra.mxu0 0.0
  %2511 = vmatprep.subr.mxu0 0.0
  %2512 = vmatpush1.msra.mxu0 0.0
  %2513 = vmatprep.subr.mxu0 0.0
  %2514 = vmatpush1.msra.mxu0 0.0
  %2515 = vmatprep.subr.mxu0 0.0
  %2516 = vmatpush1.msra.mxu0 0.0
  %2517 = vmatprep.subr.mxu0 0.0
  %2518 = vmatpush1.msra.mxu0 0.0
  %2519 = vmatprep.subr.mxu0 0.0
  %2520 = vmatpush1.msra.mxu0 0.0
  %2521 = vmatprep.subr.mxu0 0.0
  %2522 = vmatpush1.msra.mxu0 0.0
  %2523 = vmatprep.subr.mxu0 0.0
  %2524 = vmatpush1.msra.mxu0 0.0
  %2525 = vmatprep.subr.mxu0 0.0
  %2526 = vmatpush1.msra.mxu0 0.0
  %2527 = vmatprep.subr.mxu0 0.0
  %2528 = vmatpush1.msra.mxu0 0.0
  %2529 = vmatprep.subr.mxu0 0.0
  %2530 = vmatpush1.msra.mxu0 0.0
  %2531 = vmatprep.subr.mxu0 0.0
  %2532 = vmatpush1.msra.mxu0 0.0
  %2533 = vmatprep.subr.mxu0 0.0
  %2534 = vmatpush1.msra.mxu0 0.0
  %2535 = vmatprep.subr.mxu0 0.0
  %2536 = vmatpush1.msra.mxu0 0.0
  %2537 = vmatprep.subr.mxu0 0.0
  %2538 = vmatpush1.msra.mxu0 0.0
  %2539 = vmatprep.subr.mxu0 0.0
  %2540 = vmatpush1.msra.mxu0 0.0
  %2541 = vmatprep.mubr.f32.mxu0 0.0
  %v2542 = vand.u32 %v1993, 4294901760
  %2543 = vmatmul.mubr.f32.gmra.mrb[0].mxu0 %v2542
  %v2544 = vpop.f32.mrb[0].mxu0
  %v2545 = vadd.f32 %v2426, %v2544
  %v2546 = vpop.f32.mrb[0].mxu0
  %2547 = vdwg.mxu0
  %2548 = vmatprep.subr.mxu0 0.0
  %v2549 = vand.u32 %v11, 4294901760
  %2550 = vmatpush1.msra.mxu0 %v2549
  %2551 = vmatprep.subr.mxu0 0.0
  %v2552 = vand.u32 %v12, 4294901760
  %2553 = vmatpush1.msra.mxu0 %v2552
  %2554 = vmatprep.subr.mxu0 0.0
  %v2555 = vand.u32 %v13, 4294901760
  %2556 = vmatpush1.msra.mxu0 %v2555
  %2557 = vmatprep.subr.mxu0 0.0
  %v2558 = vand.u32 %v14, 4294901760
  %2559 = vmatpush1.msra.mxu0 %v2558
  %2560 = vmatprep.subr.mxu0 0.0
  %v2561 = vand.u32 %v15, 4294901760
  %2562 = vmatpush1.msra.mxu0 %v2561
  %2563 = vmatprep.subr.mxu0 0.0
  %v2564 = vand.u32 %v16, 4294901760
  %2565 = vmatpush1.msra.mxu0 %v2564
  %2566 = vmatprep.subr.mxu0 0.0
  %v2567 = vand.u32 %v17, 4294901760
  %2568 = vmatpush1.msra.mxu0 %v2567
  %2569 = vmatprep.subr.mxu0 0.0
  %v2570 = vand.u32 %v18, 4294901760
  %2571 = vmatpush1.msra.mxu0 %v2570
  %2572 = vmatprep.subr.mxu0 0.0
  %v2573 = vand.u32 %v19, 4294901760
  %2574 = vmatpush1.msra.mxu0 %v2573
  %2575 = vmatprep.subr.mxu0 0.0
  %v2576 = vand.u32 %v20, 4294901760
  %2577 = vmatpush1.msra.mxu0 %v2576
  %2578 = vmatprep.subr.mxu0 0.0
  %v2579 = vand.u32 %v21, 4294901760
  %2580 = vmatpush1.msra.mxu0 %v2579
  %2581 = vmatprep.subr.mxu0 0.0
  %v2582 = vand.u32 %v22, 4294901760
  %2583 = vmatpush1.msra.mxu0 %v2582
  %2584 = vmatprep.subr.mxu0 0.0
  %v2585 = vand.u32 %v23, 4294901760
  %2586 = vmatpush1.msra.mxu0 %v2585
  %2587 = vmatprep.subr.mxu0 0.0
  %v2588 = vand.u32 %v24, 4294901760
  %2589 = vmatpush1.msra.mxu0 %v2588
  %2590 = vmatprep.subr.mxu0 0.0
  %v2591 = vand.u32 %v25, 4294901760
  %2592 = vmatpush1.msra.mxu0 %v2591
  %2593 = vmatprep.subr.mxu0 0.0
  %v2594 = vand.u32 %v26, 4294901760
  %2595 = vmatpush1.msra.mxu0 %v2594
  %2596 = vmatprep.subr.mxu0 0.0
  %2597 = vmatpush1.msra.mxu0 0.0
  %2598 = vmatprep.subr.mxu0 0.0
  %2599 = vmatpush1.msra.mxu0 0.0
  %2600 = vmatprep.subr.mxu0 0.0
  %2601 = vmatpush1.msra.mxu0 0.0
  %2602 = vmatprep.subr.mxu0 0.0
  %2603 = vmatpush1.msra.mxu0 0.0
  %2604 = vmatprep.subr.mxu0 0.0
  %2605 = vmatpush1.msra.mxu0 0.0
  %2606 = vmatprep.subr.mxu0 0.0
  %2607 = vmatpush1.msra.mxu0 0.0
  %2608 = vmatprep.subr.mxu0 0.0
  %2609 = vmatpush1.msra.mxu0 0.0
  %2610 = vmatprep.subr.mxu0 0.0
  %2611 = vmatpush1.msra.mxu0 0.0
  %2612 = vmatprep.subr.mxu0 0.0
  %2613 = vmatpush1.msra.mxu0 0.0
  %2614 = vmatprep.subr.mxu0 0.0
  %2615 = vmatpush1.msra.mxu0 0.0
  %2616 = vmatprep.subr.mxu0 0.0
  %2617 = vmatpush1.msra.mxu0 0.0
  %2618 = vmatprep.subr.mxu0 0.0
  %2619 = vmatpush1.msra.mxu0 0.0
  %2620 = vmatprep.subr.mxu0 0.0
  %2621 = vmatpush1.msra.mxu0 0.0
  %2622 = vmatprep.subr.mxu0 0.0
  %2623 = vmatpush1.msra.mxu0 0.0
  %2624 = vmatprep.subr.mxu0 0.0
  %2625 = vmatpush1.msra.mxu0 0.0
  %2626 = vmatprep.subr.mxu0 0.0
  %2627 = vmatpush1.msra.mxu0 0.0
  %2628 = vmatprep.mubr.f32.mxu0 0.0
  %v2629 = vand.u32 %v1993, 4294901760
  %2630 = vmatmul.mubr.f32.gmra.mrb[0].mxu0 %v2629
  %v2631 = vpop.f32.mrb[0].mxu0
  %v2632 = vadd.f32 %v2545, %v2631
  %v2633 = vpop.f32.mrb[0].mxu0
  %2634 = vdwg.mxu0
  %2636 = vrot.lane.b32.xlu0 %v2632, 96
  %v2637 = vpop.permute.xlu0 %2636
  %vm2639 = vcmask 1048320
  %2640 = vst.msk [vmem:[%s2] sm:$0xff] %vm2639, %v2637
  // Predicated region
  $region10: #{feature_embedding.1} parent=0 // pred_check
    _
  $region11: #{feature_embedding.1} parent=0 // pred_check_branch
    %2642 = sbr.rel (0) target = $region13
  $region12: #{feature_embedding.1} parent=0 // pred_region
    _
  $region13: #{feature_embedding.1} parent=0 // pred_fallthru
    _
  // Predicated region
  $region14: #{feature_embedding.1} parent=0 // pred_check
    _
  $region15: #{feature_embedding.1} parent=0 // pred_check_branch
    %2644 = sbr.rel (0) target = $region17
  $region16: #{feature_embedding.1} parent=0 // pred_region
    _
  $region17: #{feature_embedding.1} parent=0 // pred_fallthru
    _

</llo_original>
